<compile_context>
chip_gen: v7x
topology: tpu7x:2x2x1
jax: 0.10.0
libtpu: 0.0.40
codegen_flags: <defaults>
</compile_context>

<pallas_src>
import functools

import jax
import jax.numpy as jnp
from jax.experimental import pallas as pl
from jax.experimental.pallas import tpu as pltpu


# ----------------------------------------------------------------------------
# Kernel
# ----------------------------------------------------------------------------
def _bilstm_layer_kernel(xf_ref, xr_ref, wxf_ref, wxr_ref, whh_ref, b_ref,
                         y_ref,
                         gxf_scr, gxr_scr, h_scr, c_scr,
                         *, T, Tc, nc, Bp, H):
    """One time-chunk of a fused (fwd + rev) bidirectional LSTM layer.

    xf_ref : (Tc*Bp, 2H) bf16  forward chunk (padded-time chunk i)
    xr_ref : (Tc*Bp, 2H) bf16  reverse chunk (padded-time chunk nc-1-i)
    wx*    : (2H, 8H)  bf16    gate-major input-projection weights per direction
    whh    : (2H, 8H)  bf16    gate-major block-diag recurrent weights [h_f|h_r]
    b_ref  : (1, 8H)   f32     gate-major bias (b_ih + b_hh, both directions)
    y_ref  : (Tp, Bp, 2H)      full layer output, resident in VMEM across grid
    gx*_scr: (Tc*Bp, 8H) f32   hoisted per-chunk input-projection preactivations
    h_scr  : (Bp, 2H) f32      recurrent h state [fwd | rev], persists across chunks
    c_scr  : (Bp, 2H) f32      recurrent c state [fwd | rev]
    """
    i = pl.program_id(0)
    Tp = nc * Tc
    pad = Tp - T
    two_h = 2 * H

    @pl.when(i == 0)
    def _():
        h_scr[...] = jnp.zeros_like(h_scr)
        c_scr[...] = jnp.zeros_like(c_scr)

    # ---- Input projection: off the recurrence critical path ----------------
    # One dense MXU matmul per direction for the whole chunk (M = Tc*Bp rows).
    # The bias is folded in here once (not re-broadcast in the unrolled loop).
    bias = b_ref[...]                                              # (1, 8H) f32
    gxf_scr[...] = jnp.dot(xf_ref[...], wxf_ref[...],
                           preferred_element_type=jnp.float32) + bias
    gxr_scr[...] = jnp.dot(xr_ref[...], wxr_ref[...],
                           preferred_element_type=jnp.float32)

    whh = whh_ref[...]                                             # (2H, 8H) bf16

    if pad:
        lane = jax.lax.broadcasted_iota(jnp.int32, (1, two_h), 1)

    def step(j, carry):
        h, c = carry                       # (Bp, 2H) f32, columns [fwd | rev]
        jr = Tc - 1 - j                    # reverse walks its chunk backwards

        # Recurrent part only: (Bp, 2H) x (2H, 8H) -> gates of both directions.
        rec = jnp.dot(h.astype(whh.dtype), whh,
                      preferred_element_type=jnp.float32)          # (Bp, 8H)
        rf = pl.multiple_of(j * Bp, Bp)
        rr = pl.multiple_of(jr * Bp, Bp)
        g = gxf_scr[pl.ds(rf, Bp), :] + gxr_scr[pl.ds(rr, Bp), :] + rec

        # Gate-major columns: one pass of 2H-wide slices covers both directions.
        i_g = jax.nn.sigmoid(g[:, 0 * two_h:1 * two_h])
        f_g = jax.nn.sigmoid(g[:, 1 * two_h:2 * two_h])
        g_g = jnp.tanh(g[:, 2 * two_h:3 * two_h])
        o_g = jax.nn.sigmoid(g[:, 3 * two_h:4 * two_h])
        c_new = f_g * c + i_g * g_g
        h_new = o_g * jnp.tanh(c_new)

        if pad:
            # Freeze state on padded timesteps: fwd pads at the tail of its
            # traversal, rev at the head.  Padded output rows are sliced off
            # by the wrapper, so stores need no guard.
            p = i * Tc + j
            keep = jnp.where(lane < H, p < T, p >= pad)            # (1, 2H) bool
            h_new = jnp.where(keep, h_new, h)
            c_new = jnp.where(keep, c_new, c)

        # fwd half at padded time i*Tc + j ; rev half at padded time
        # (nc-1-i)*Tc + jr (= Tp-1 - (i*Tc + j)).
        t_f = i * Tc + j
        t_r = (nc - 1 - i) * Tc + jr
        y_ref[t_f, :, 0:H] = h_new[:, 0:H].astype(y_ref.dtype)
        y_ref[t_r, :, H:two_h] = h_new[:, H:two_h].astype(y_ref.dtype)
        return h_new, c_new

    # Tc <= 32 by construction; the per-step body is small after the
    # projection hoist, so a full unroll is safe (sweep 8/16 for larger Tc).
    h, c = jax.lax.fori_loop(0, Tc, step, (h_scr[...], c_scr[...]), unroll=True)

    # Persist recurrent state for the next time chunk.
    h_scr[...] = h
    c_scr[...] = c


# ----------------------------------------------------------------------------
# Per-layer pallas_call wrapper
# ----------------------------------------------------------------------------
def _run_bilstm_layer(x2d, wxf, wxr, whh, bias, *, T, Tc, nc, Bp, H):
    """One bidirectional LSTM layer.

    x2d : (Tp*Bp, 2H) bf16, rows ordered (padded time, padded batch).
    Returns the layer output in the same (Tp*Bp, 2H) layout / dtype.
    """
    R = Tc * Bp
    Tp = nc * Tc
    two_h = 2 * H
    kernel = functools.partial(_bilstm_layer_kernel,
                               T=T, Tc=Tc, nc=nc, Bp=Bp, H=H)

    grid_spec = pltpu.PrefetchScalarGridSpec(
        num_scalar_prefetch=0,
        grid=(nc,),
        in_specs=[
            pl.BlockSpec((R, two_h), lambda i: (i, 0)),              # fwd chunk
            pl.BlockSpec((R, two_h), lambda i: (nc - 1 - i, 0)),     # rev chunk (mirrored)
            pl.BlockSpec(wxf.shape, lambda i: (0, 0)),               # resident weights
            pl.BlockSpec(wxr.shape, lambda i: (0, 0)),
            pl.BlockSpec(whh.shape, lambda i: (0, 0)),
            pl.BlockSpec(bias.shape, lambda i: (0, 0)),
        ],
        # Single merged output, resident in VMEM for the whole grid (both
        # directions write their column half; written back to HBM once).
        out_specs=pl.BlockSpec((Tp, Bp, two_h), lambda i: (0, 0, 0)),
        scratch_shapes=[
            pltpu.VMEM((R, 8 * H), jnp.float32),    # hoisted gates_x (fwd, +bias)
            pltpu.VMEM((R, 8 * H), jnp.float32),    # hoisted gates_x (rev)
            pltpu.VMEM((Bp, two_h), jnp.float32),   # h state [fwd | rev]
            pltpu.VMEM((Bp, two_h), jnp.float32),   # c state [fwd | rev]
        ],
    )

    y = pl.pallas_call(
        kernel,
        out_shape=jax.ShapeDtypeStruct((Tp, Bp, two_h), x2d.dtype),
        grid_spec=grid_spec,
        compiler_params=pltpu.CompilerParams(
            dimension_semantics=("arbitrary",),      # time recurrence is sequential
            vmem_limit_bytes=32 * 1024 * 1024,
        ),
    )(x2d, x2d, wxf, wxr, whh, bias)
    return y.reshape(Tp * Bp, two_h)


# ----------------------------------------------------------------------------
# Parameter fusion (PyTorch nn.LSTM layout -> kernel layout)
# ----------------------------------------------------------------------------
def fuse_bilstm_layer_params(fwd, rev, compute_dtype=jnp.bfloat16):
    """fwd / rev: (w_ih (4H, 2H), w_hh (4H, H), b_ih (4H,), b_hh (4H,)).

    Returns (wxf, wxr, whh, bias) in gate-major fused column layout
    [i_f i_r | f_f f_r | g_f g_r | o_f o_r] (each block H wide):
      wxf / wxr : (2H, 8H) input-projection weights (zeros in the other
                  direction's columns so gxf + gxr adds cleanly),
      whh       : (2H, 8H) block-diag recurrent weights for h = [h_f | h_r],
      bias      : (1, 8H)  b_ih + b_hh per direction.
    """
    w_ih_f, w_hh_f, b_ih_f, b_hh_f = fwd
    w_ih_r, w_hh_r, b_ih_r, b_hh_r = rev
    H = w_hh_f.shape[1]
    d_in = w_ih_f.shape[1]
    assert d_in == 2 * H, "BiLstm layers always have input_size == 2 * hidden_size"

    def gate_major(mf, mr):
        # mf, mr: (rows, 4H) in PyTorch gate order [i|f|g|o] per direction.
        cols = []
        for g in range(4):
            cols.append(mf[:, g * H:(g + 1) * H])
            cols.append(mr[:, g * H:(g + 1) * H])
        return jnp.concatenate(cols, axis=1)                     # (rows, 8H)

    zx = jnp.zeros((d_in, 4 * H), jnp.float32)
    zh = jnp.zeros((H, 4 * H), jnp.float32)

    wxf = gate_major(w_ih_f.T, zx)                               # (2H, 8H)
    wxr = gate_major(zx, w_ih_r.T)                               # (2H, 8H)
    whh = gate_major(jnp.concatenate([w_hh_f.T, zh], axis=0),
                     jnp.concatenate([zh, w_hh_r.T], axis=0))    # (2H, 8H)
    bias = gate_major((b_ih_f + b_hh_f)[None, :],
                      (b_ih_r + b_hh_r)[None, :])                # (1, 8H)
    return (wxf.astype(compute_dtype), wxr.astype(compute_dtype),
            whh.astype(compute_dtype), bias.astype(jnp.float32))


def init_bilstm_raw_params(key, d_model, num_layers):
    """Deterministic synthetic weights in PyTorch nn.LSTM shape conventions."""
    assert d_model % 2 == 0
    H = d_model // 2
    scale = 0.1
    raw = []
    for _layer in range(num_layers):
        d_in = d_model  # every layer: input_size == 2 * hidden_size == d_model
        dirs = []
        for _direction in range(2):  # forward, reverse
            key, k1, k2, k3, k4 = jax.random.split(key, 5)
            w_ih = scale * jax.random.normal(k1, (4 * H, d_in), jnp.float32)
            w_hh = scale * jax.random.normal(k2, (4 * H, H), jnp.float32)
            b_ih = scale * jax.random.normal(k3, (4 * H,), jnp.float32)
            b_hh = scale * jax.random.normal(k4, (4 * H,), jnp.float32)
            dirs.append((w_ih, w_hh, b_ih, b_hh))
        raw.append((dirs[0], dirs[1]))
    return raw


# ----------------------------------------------------------------------------
# Module forward (glue in JAX, recurrence in Pallas)
# ----------------------------------------------------------------------------
@jax.jit
def _bilstm_apply(visual, query_embed, params):
    bs, L, d_model = visual.shape
    n_q = query_embed.shape[0]
    H = d_model // 2
    T = L + n_q

    # query_embed.unsqueeze(1).repeat(1, bs, 1).permute(1, 0, 2)
    query_target = jnp.broadcast_to(query_embed[:, None, :], (n_q, bs, d_model))
    query_target = jnp.transpose(query_target, (1, 0, 2))            # (B, n_q, D)
    content = jnp.concatenate([visual, query_target], axis=1)        # (B, T, D)
    seq = jnp.transpose(content, (1, 0, 2))                          # (T, B, D)

    compute_dtype = params[0][0].dtype

    # Chunking / padding: pad time up to nc*Tc (padded steps are masked in the
    # kernel) and batch up to a multiple of 8 sublanes (padded rows sliced off).
    max_chunk = 32
    Tc = min(T, max_chunk)
    nc = -(-T // Tc)
    Tp = nc * Tc
    Bp = max(8, ((bs + 7) // 8) * 8)

    x = jnp.zeros((Tp, Bp, d_model), compute_dtype)
    x = x.at[:T, :bs, :].set(seq.astype(compute_dtype))
    x2d = x.reshape(Tp * Bp, d_model)                                 # rows = (time, batch)

    for wxf, wxr, whh, bias in params:
        x2d = _run_bilstm_layer(x2d, wxf, wxr, whh, bias,
                                T=T, Tc=Tc, nc=nc, Bp=Bp, H=H)

    out = x2d.reshape(Tp, Bp, d_model)[:T, :bs, :]                    # (T, B, 2H)
    out = jnp.transpose(out, (1, 0, 2)).astype(jnp.float32)           # (B, T, 2H)
    return out[:, n_q:, :]


def bilstm_forward(visual, query_embed, track_nums, params, mask=None):
    """Mirror of BiLstm.forward (track_nums / mask are unused, as in the module)."""
    del track_nums, mask
    return _bilstm_apply(visual, query_embed, params)


# ----------------------------------------------------------------------------
# Pure-JAX reference (PyTorch nn.LSTM math, f32) for correctness checking
# ----------------------------------------------------------------------------
def _reference_forward(visual, query_embed, raw_params):
    bs = visual.shape[0]
    n_q, d_model = query_embed.shape
    H = d_model // 2
    query_target = jnp.broadcast_to(query_embed[:, None, :], (n_q, bs, d_model))
    query_target = jnp.transpose(query_target, (1, 0, 2))
    content = jnp.concatenate([visual, query_target], axis=1)
    x = jnp.transpose(content, (1, 0, 2))                             # (T, B, D)
    for fwd, rev in raw_params:
        outs = []
        for (w_ih, w_hh, b_ih, b_hh), reverse in ((fwd, False), (rev, True)):
            xs = x[::-1] if reverse else x
            B = x.shape[1]

            def cell(carry, xt, w_ih=w_ih, w_hh=w_hh, b_ih=b_ih, b_hh=b_hh):
                h, c = carry
                gates = xt @ w_ih.T + b_ih + h @ w_hh.T + b_hh
                i_g = jax.nn.sigmoid(gates[:, 0 * H:1 * H])
                f_g = jax.nn.sigmoid(gates[:, 1 * H:2 * H])
                g_g = jnp.tanh(gates[:, 2 * H:3 * H])
                o_g = jax.nn.sigmoid(gates[:, 3 * H:4 * H])
                c = f_g * c + i_g * g_g
                h = o_g * jnp.tanh(c)
                return (h, c), h

            init = (jnp.zeros((B, H), jnp.float32), jnp.zeros((B, H), jnp.float32))
            _, ys = jax.lax.scan(cell, init, xs)
            if reverse:
                ys = ys[::-1]
            outs.append(ys)
        x = jnp.concatenate(outs, axis=-1)
    out = jnp.transpose(x, (1, 0, 2))
    return out[:, n_q:, :]


if __name__ == "__main__":
    # Small shapes consistent with the module's forward:
    #   d_model even (hidden = d_model // 2); num_layers = sample_num + track_num.
    d_model = 32
    sample_num, track_num = 2, 1
    num_layers = sample_num + track_num
    bs, L_vis, n_q = 2, 8, 4

    key = jax.random.PRNGKey(0)
    key, kv, kq = jax.random.split(key, 3)
    visual = jax.random.normal(kv, (bs, L_vis, d_model), jnp.float32)
    query_embed = jax.random.normal(kq, (n_q, d_model), jnp.float32)

    raw_params = init_bilstm_raw_params(key, d_model, num_layers)
    params = [fuse_bilstm_layer_params(f, r) for f, r in raw_params]

    out = bilstm_forward(visual, query_embed, track_nums=track_num, params=params)
    out = jax.block_until_ready(out)

    assert out.shape == (bs, L_vis, d_model), out.shape
    assert bool(jnp.all(jnp.isfinite(out)))

    # Correctness vs. an fp32 pure-JAX LSTM reference (loose tol: bf16 weights).
    ref = _reference_forward(visual, query_embed, raw_params)
    max_err = float(jnp.max(jnp.abs(out - ref)))
    assert max_err < 5e-2, f"max abs err vs reference: {max_err}"

    print("KERNEL_OK")
</pallas_src>

<mosaic_0001>
module attributes {stable_mosaic.version = 11 : i64} {
  func.func @_bilstm_layer_kernel(%arg0: i32, %arg1: memref<96x32xbf16, #tpu.memory_space<vmem>>, %arg2: memref<96x32xbf16, #tpu.memory_space<vmem>>, %arg3: memref<32x128xbf16, #tpu.memory_space<vmem>>, %arg4: memref<32x128xbf16, #tpu.memory_space<vmem>>, %arg5: memref<32x128xbf16, #tpu.memory_space<vmem>>, %arg6: memref<1x128xf32, #tpu.memory_space<vmem>>, %arg7: memref<12x8x32xbf16, #tpu.memory_space<vmem>>, %arg8: memref<96x128xf32, #tpu.memory_space<vmem>>, %arg9: memref<96x128xf32, #tpu.memory_space<vmem>>, %arg10: memref<8x32xf32, #tpu.memory_space<vmem>>, %arg11: memref<8x32xf32, #tpu.memory_space<vmem>>) attributes {dimension_semantics = [#tpu.dimension_semantics<arbitrary>], iteration_bounds = array<i64: 1>, scalar_prefetch = 0 : i64, scratch_operands = 4 : i64, tpu.core_type = #tpu.core_type<tc>, window_params = [{transform_indices = @transform_0, window_bounds = array<i64: 96, 32>}, {transform_indices = @transform_1, window_bounds = array<i64: 96, 32>}, {pipeline_mode = #tpu.pipeline_mode<synchronous>, transform_indices = @transform_2, window_bounds = array<i64: 32, 128>}, {pipeline_mode = #tpu.pipeline_mode<synchronous>, transform_indices = @transform_3, window_bounds = array<i64: 32, 128>}, {pipeline_mode = #tpu.pipeline_mode<synchronous>, transform_indices = @transform_4, window_bounds = array<i64: 32, 128>}, {pipeline_mode = #tpu.pipeline_mode<synchronous>, transform_indices = @transform_5, window_bounds = array<i64: 1, 128>}, {pipeline_mode = #tpu.pipeline_mode<synchronous>, transform_indices = @transform_6, window_bounds = array<i64: 12, 8, 32>}]} {
    %c0_i32 = arith.constant 0 : i32
    %0 = arith.cmpi eq, %arg0, %c0_i32 : i32
    %1 = arith.extui %0 : i1 to i32
    %c0_i32_0 = arith.constant 0 : i32
    %2 = arith.cmpi ne, %1, %c0_i32_0 : i32
    scf.if %2 {
      %cst_217 = arith.constant 0.000000e+00 : f32
      %679 = vector.broadcast %cst_217 : f32 to vector<8x32xf32>
      %c0_218 = arith.constant 0 : index
      %c0_219 = arith.constant 0 : index
      %680 = vector.load %arg10[%c0_218, %c0_219] : memref<8x32xf32, #tpu.memory_space<vmem>>, vector<8x32xf32>
      tpu.vector_store %arg10[%c0_218, %c0_219], %679 {strides = array<i32>} : memref<8x32xf32, #tpu.memory_space<vmem>>, vector<8x32xf32>,
      %cst_220 = arith.constant 0.000000e+00 : f32
      %681 = vector.broadcast %cst_220 : f32 to vector<8x32xf32>
      %c0_221 = arith.constant 0 : index
      %c0_222 = arith.constant 0 : index
      %682 = vector.load %arg11[%c0_221, %c0_222] : memref<8x32xf32, #tpu.memory_space<vmem>>, vector<8x32xf32>
      tpu.vector_store %arg11[%c0_221, %c0_222], %681 {strides = array<i32>} : memref<8x32xf32, #tpu.memory_space<vmem>>, vector<8x32xf32>,
    } else {
    }
    %c0 = arith.constant 0 : index
    %c0_1 = arith.constant 0 : index
    %3 = vector.load %arg6[%c0, %c0_1] : memref<1x128xf32, #tpu.memory_space<vmem>>, vector<1x128xf32>
    %c0_2 = arith.constant 0 : index
    %c0_3 = arith.constant 0 : index
    %4 = vector.load %arg1[%c0_2, %c0_3] : memref<96x32xbf16, #tpu.memory_space<vmem>>, vector<96x32xbf16>
    %c0_4 = arith.constant 0 : index
    %c0_5 = arith.constant 0 : index
    %5 = vector.load %arg3[%c0_4, %c0_5] : memref<32x128xbf16, #tpu.memory_space<vmem>>, vector<32x128xbf16>
    %cst = arith.constant dense<0.000000e+00> : vector<96x128xf32>
    %6 = tpu.matmul %4, %5, %cst {dimension_numbers = #tpu.dot_dimension_numbers<[1], [0], [0], [1], [0, 0, 1, 1], [], []>} : vector<96x32xbf16>, vector<32x128xbf16>, vector<96x128xf32> -> vector<96x128xf32>
    %7 = vector.broadcast %3 : vector<1x128xf32> to vector<96x128xf32>
    %8 = arith.addf %6, %7 : vector<96x128xf32>
    %c0_6 = arith.constant 0 : index
    %c0_7 = arith.constant 0 : index
    %9 = vector.load %arg8[%c0_6, %c0_7] : memref<96x128xf32, #tpu.memory_space<vmem>>, vector<96x128xf32>
    tpu.vector_store %arg8[%c0_6, %c0_7], %8 {strides = array<i32>} : memref<96x128xf32, #tpu.memory_space<vmem>>, vector<96x128xf32>,
    %c0_8 = arith.constant 0 : index
    %c0_9 = arith.constant 0 : index
    %10 = vector.load %arg2[%c0_8, %c0_9] : memref<96x32xbf16, #tpu.memory_space<vmem>>, vector<96x32xbf16>
    %c0_10 = arith.constant 0 : index
    %c0_11 = arith.constant 0 : index
    %11 = vector.load %arg4[%c0_10, %c0_11] : memref<32x128xbf16, #tpu.memory_space<vmem>>, vector<32x128xbf16>
    %cst_12 = arith.constant dense<0.000000e+00> : vector<96x128xf32>
    %12 = tpu.matmul %10, %11, %cst_12 {dimension_numbers = #tpu.dot_dimension_numbers<[1], [0], [0], [1], [0, 0, 1, 1], [], []>} : vector<96x32xbf16>, vector<32x128xbf16>, vector<96x128xf32> -> vector<96x128xf32>
    %c0_13 = arith.constant 0 : index
    %c0_14 = arith.constant 0 : index
    %13 = vector.load %arg9[%c0_13, %c0_14] : memref<96x128xf32, #tpu.memory_space<vmem>>, vector<96x128xf32>
    tpu.vector_store %arg9[%c0_13, %c0_14], %12 {strides = array<i32>} : memref<96x128xf32, #tpu.memory_space<vmem>>, vector<96x128xf32>,
    %c0_15 = arith.constant 0 : index
    %c0_16 = arith.constant 0 : index
    %14 = vector.load %arg5[%c0_15, %c0_16] : memref<32x128xbf16, #tpu.memory_space<vmem>>, vector<32x128xbf16>
    %c0_17 = arith.constant 0 : index
    %c0_18 = arith.constant 0 : index
    %15 = vector.load %arg10[%c0_17, %c0_18] : memref<8x32xf32, #tpu.memory_space<vmem>>, vector<8x32xf32>
    %c0_19 = arith.constant 0 : index
    %c0_20 = arith.constant 0 : index
    %16 = vector.load %arg11[%c0_19, %c0_20] : memref<8x32xf32, #tpu.memory_space<vmem>>, vector<8x32xf32>
    %c0_i32_21 = arith.constant 0 : i32
    %c11_i32 = arith.constant 11 : i32
    %17 = arith.subi %c11_i32, %c0_i32_21 : i32
    %18 = arith.truncf %15 : vector<8x32xf32> to vector<8x32xbf16>
    %cst_22 = arith.constant dense<0.000000e+00> : vector<8x128xf32>
    %19 = tpu.matmul %18, %14, %cst_22 {dimension_numbers = #tpu.dot_dimension_numbers<[1], [0], [0], [1], [0, 0, 1, 1], [], []>} : vector<8x32xbf16>, vector<32x128xbf16>, vector<8x128xf32> -> vector<8x128xf32>
    %c8_i32 = arith.constant 8 : i32
    %20 = arith.muli %c0_i32_21, %c8_i32 : i32
    %21 = tpu.assume_multiple %20, 8 : i32
    %c8_i32_23 = arith.constant 8 : i32
    %22 = arith.muli %17, %c8_i32_23 : i32
    %23 = tpu.assume_multiple %22, 8 : i32
    %24 = arith.index_cast %21 : i32 to index
    %c0_24 = arith.constant 0 : index
    %25 = vector.load %arg8[%24, %c0_24] : memref<96x128xf32, #tpu.memory_space<vmem>>, vector<8x128xf32>
    %26 = arith.index_cast %23 : i32 to index
    %c0_25 = arith.constant 0 : index
    %27 = vector.load %arg9[%26, %c0_25] : memref<96x128xf32, #tpu.memory_space<vmem>>, vector<8x128xf32>
    %28 = arith.addf %25, %27 : vector<8x128xf32>
    %29 = arith.addf %28, %19 : vector<8x128xf32>
    %30 = vector.extract_strided_slice %29 {offsets = [0, 0], sizes = [8, 32], strides = [1, 1]} : vector<8x128xf32> to vector<8x32xf32>
    %31 = arith.negf %30 : vector<8x32xf32>
    %32 = math.exp %31 : vector<8x32xf32>
    %cst_26 = arith.constant 1.000000e+00 : f32
    %33 = vector.broadcast %cst_26 : f32 to vector<8x32xf32>
    %34 = arith.addf %33, %32 : vector<8x32xf32>
    %35 = arith.divf %33, %34 : vector<8x32xf32>
    %36 = vector.extract_strided_slice %29 {offsets = [0, 32], sizes = [8, 32], strides = [1, 1]} : vector<8x128xf32> to vector<8x32xf32>
    %37 = arith.negf %36 : vector<8x32xf32>
    %38 = math.exp %37 : vector<8x32xf32>
    %cst_27 = arith.constant 1.000000e+00 : f32
    %39 = vector.broadcast %cst_27 : f32 to vector<8x32xf32>
    %40 = arith.addf %39, %38 : vector<8x32xf32>
    %41 = arith.divf %39, %40 : vector<8x32xf32>
    %42 = vector.extract_strided_slice %29 {offsets = [0, 64], sizes = [8, 32], strides = [1, 1]} : vector<8x128xf32> to vector<8x32xf32>
    %43 = math.tanh %42 : vector<8x32xf32>
    %44 = vector.extract_strided_slice %29 {offsets = [0, 96], sizes = [8, 32], strides = [1, 1]} : vector<8x128xf32> to vector<8x32xf32>
    %45 = arith.negf %44 : vector<8x32xf32>
    %46 = math.exp %45 : vector<8x32xf32>
    %cst_28 = arith.constant 1.000000e+00 : f32
    %47 = vector.broadcast %cst_28 : f32 to vector<8x32xf32>
    %48 = arith.addf %47, %46 : vector<8x32xf32>
    %49 = arith.divf %47, %48 : vector<8x32xf32>
    %50 = arith.mulf %41, %16 : vector<8x32xf32>
    %51 = arith.mulf %35, %43 : vector<8x32xf32>
    %52 = arith.addf %50, %51 : vector<8x32xf32>
    %53 = math.tanh %52 : vector<8x32xf32>
    %54 = arith.mulf %49, %53 : vector<8x32xf32>
    %c12_i32 = arith.constant 12 : i32
    %55 = arith.muli %arg0, %c12_i32 : i32
    %56 = arith.addi %55, %c0_i32_21 : i32
    %c0_i32_29 = arith.constant 0 : i32
    %57 = arith.subi %c0_i32_29, %arg0 : i32
    %c12_i32_30 = arith.constant 12 : i32
    %58 = arith.muli %57, %c12_i32_30 : i32
    %59 = arith.addi %58, %17 : i32
    %60 = vector.extract_strided_slice %54 {offsets = [0, 0], sizes = [8, 16], strides = [1, 1]} : vector<8x32xf32> to vector<8x16xf32>
    %61 = arith.truncf %60 : vector<8x16xf32> to vector<8x16xbf16>
    %62 = arith.index_cast %56 : i32 to index
    %c0_31 = arith.constant 0 : index
    %c0_32 = arith.constant 0 : index
    %63 = vector.load %arg7[%62, %c0_31, %c0_32] : memref<12x8x32xbf16, #tpu.memory_space<vmem>>, vector<1x8x16xbf16>
    %64 = vector.shape_cast %63 : vector<1x8x16xbf16> to vector<8x16xbf16>
    %65 = vector.shape_cast %61 : vector<8x16xbf16> to vector<1x8x16xbf16>
    tpu.vector_store %arg7[%62, %c0_31, %c0_32], %65 {strides = array<i32>} : memref<12x8x32xbf16, #tpu.memory_space<vmem>>, vector<1x8x16xbf16>,
    %66 = vector.extract_strided_slice %54 {offsets = [0, 16], sizes = [8, 16], strides = [1, 1]} : vector<8x32xf32> to vector<8x16xf32>
    %67 = arith.truncf %66 : vector<8x16xf32> to vector<8x16xbf16>
    %68 = arith.index_cast %59 : i32 to index
    %c0_33 = arith.constant 0 : index
    %c16 = arith.constant 16 : index
    %69 = vector.load %arg7[%68, %c0_33, %c16] : memref<12x8x32xbf16, #tpu.memory_space<vmem>>, vector<1x8x16xbf16>
    %70 = vector.shape_cast %69 : vector<1x8x16xbf16> to vector<8x16xbf16>
    %71 = vector.shape_cast %67 : vector<8x16xbf16> to vector<1x8x16xbf16>
    tpu.vector_store %arg7[%68, %c0_33, %c16], %71 {strides = array<i32>} : memref<12x8x32xbf16, #tpu.memory_space<vmem>>, vector<1x8x16xbf16>,
    %c1_i32 = arith.constant 1 : i32
    %c11_i32_34 = arith.constant 11 : i32
    %72 = arith.subi %c11_i32_34, %c1_i32 : i32
    %73 = arith.truncf %54 : vector<8x32xf32> to vector<8x32xbf16>
    %cst_35 = arith.constant dense<0.000000e+00> : vector<8x128xf32>
    %74 = tpu.matmul %73, %14, %cst_35 {dimension_numbers = #tpu.dot_dimension_numbers<[1], [0], [0], [1], [0, 0, 1, 1], [], []>} : vector<8x32xbf16>, vector<32x128xbf16>, vector<8x128xf32> -> vector<8x128xf32>
    %c8_i32_36 = arith.constant 8 : i32
    %75 = arith.muli %c1_i32, %c8_i32_36 : i32
    %76 = tpu.assume_multiple %75, 8 : i32
    %c8_i32_37 = arith.constant 8 : i32
    %77 = arith.muli %72, %c8_i32_37 : i32
    %78 = tpu.assume_multiple %77, 8 : i32
    %79 = arith.index_cast %76 : i32 to index
    %c0_38 = arith.constant 0 : index
    %80 = vector.load %arg8[%79, %c0_38] : memref<96x128xf32, #tpu.memory_space<vmem>>, vector<8x128xf32>
    %81 = arith.index_cast %78 : i32 to index
    %c0_39 = arith.constant 0 : index
    %82 = vector.load %arg9[%81, %c0_39] : memref<96x128xf32, #tpu.memory_space<vmem>>, vector<8x128xf32>
    %83 = arith.addf %80, %82 : vector<8x128xf32>
    %84 = arith.addf %83, %74 : vector<8x128xf32>
    %85 = vector.extract_strided_slice %84 {offsets = [0, 0], sizes = [8, 32], strides = [1, 1]} : vector<8x128xf32> to vector<8x32xf32>
    %86 = arith.negf %85 : vector<8x32xf32>
    %87 = math.exp %86 : vector<8x32xf32>
    %cst_40 = arith.constant 1.000000e+00 : f32
    %88 = vector.broadcast %cst_40 : f32 to vector<8x32xf32>
    %89 = arith.addf %88, %87 : vector<8x32xf32>
    %90 = arith.divf %88, %89 : vector<8x32xf32>
    %91 = vector.extract_strided_slice %84 {offsets = [0, 32], sizes = [8, 32], strides = [1, 1]} : vector<8x128xf32> to vector<8x32xf32>
    %92 = arith.negf %91 : vector<8x32xf32>
    %93 = math.exp %92 : vector<8x32xf32>
    %cst_41 = arith.constant 1.000000e+00 : f32
    %94 = vector.broadcast %cst_41 : f32 to vector<8x32xf32>
    %95 = arith.addf %94, %93 : vector<8x32xf32>
    %96 = arith.divf %94, %95 : vector<8x32xf32>
    %97 = vector.extract_strided_slice %84 {offsets = [0, 64], sizes = [8, 32], strides = [1, 1]} : vector<8x128xf32> to vector<8x32xf32>
    %98 = math.tanh %97 : vector<8x32xf32>
    %99 = vector.extract_strided_slice %84 {offsets = [0, 96], sizes = [8, 32], strides = [1, 1]} : vector<8x128xf32> to vector<8x32xf32>
    %100 = arith.negf %99 : vector<8x32xf32>
    %101 = math.exp %100 : vector<8x32xf32>
    %cst_42 = arith.constant 1.000000e+00 : f32
    %102 = vector.broadcast %cst_42 : f32 to vector<8x32xf32>
    %103 = arith.addf %102, %101 : vector<8x32xf32>
    %104 = arith.divf %102, %103 : vector<8x32xf32>
    %105 = arith.mulf %96, %52 : vector<8x32xf32>
    %106 = arith.mulf %90, %98 : vector<8x32xf32>
    %107 = arith.addf %105, %106 : vector<8x32xf32>
    %108 = math.tanh %107 : vector<8x32xf32>
    %109 = arith.mulf %104, %108 : vector<8x32xf32>
    %c12_i32_43 = arith.constant 12 : i32
    %110 = arith.muli %arg0, %c12_i32_43 : i32
    %111 = arith.addi %110, %c1_i32 : i32
    %c0_i32_44 = arith.constant 0 : i32
    %112 = arith.subi %c0_i32_44, %arg0 : i32
    %c12_i32_45 = arith.constant 12 : i32
    %113 = arith.muli %112, %c12_i32_45 : i32
    %114 = arith.addi %113, %72 : i32
    %115 = vector.extract_strided_slice %109 {offsets = [0, 0], sizes = [8, 16], strides = [1, 1]} : vector<8x32xf32> to vector<8x16xf32>
    %116 = arith.truncf %115 : vector<8x16xf32> to vector<8x16xbf16>
    %117 = arith.index_cast %111 : i32 to index
    %c0_46 = arith.constant 0 : index
    %c0_47 = arith.constant 0 : index
    %118 = vector.load %arg7[%117, %c0_46, %c0_47] : memref<12x8x32xbf16, #tpu.memory_space<vmem>>, vector<1x8x16xbf16>
    %119 = vector.shape_cast %118 : vector<1x8x16xbf16> to vector<8x16xbf16>
    %120 = vector.shape_cast %116 : vector<8x16xbf16> to vector<1x8x16xbf16>
    tpu.vector_store %arg7[%117, %c0_46, %c0_47], %120 {strides = array<i32>} : memref<12x8x32xbf16, #tpu.memory_space<vmem>>, vector<1x8x16xbf16>,
    %121 = vector.extract_strided_slice %109 {offsets = [0, 16], sizes = [8, 16], strides = [1, 1]} : vector<8x32xf32> to vector<8x16xf32>
    %122 = arith.truncf %121 : vector<8x16xf32> to vector<8x16xbf16>
    %123 = arith.index_cast %114 : i32 to index
    %c0_48 = arith.constant 0 : index
    %c16_49 = arith.constant 16 : index
    %124 = vector.load %arg7[%123, %c0_48, %c16_49] : memref<12x8x32xbf16, #tpu.memory_space<vmem>>, vector<1x8x16xbf16>
    %125 = vector.shape_cast %124 : vector<1x8x16xbf16> to vector<8x16xbf16>
    %126 = vector.shape_cast %122 : vector<8x16xbf16> to vector<1x8x16xbf16>
    tpu.vector_store %arg7[%123, %c0_48, %c16_49], %126 {strides = array<i32>} : memref<12x8x32xbf16, #tpu.memory_space<vmem>>, vector<1x8x16xbf16>,
    %c2_i32 = arith.constant 2 : i32
    %c11_i32_50 = arith.constant 11 : i32
    %127 = arith.subi %c11_i32_50, %c2_i32 : i32
    %128 = arith.truncf %109 : vector<8x32xf32> to vector<8x32xbf16>
    %cst_51 = arith.constant dense<0.000000e+00> : vector<8x128xf32>
    %129 = tpu.matmul %128, %14, %cst_51 {dimension_numbers = #tpu.dot_dimension_numbers<[1], [0], [0], [1], [0, 0, 1, 1], [], []>} : vector<8x32xbf16>, vector<32x128xbf16>, vector<8x128xf32> -> vector<8x128xf32>
    %c8_i32_52 = arith.constant 8 : i32
    %130 = arith.muli %c2_i32, %c8_i32_52 : i32
    %131 = tpu.assume_multiple %130, 8 : i32
    %c8_i32_53 = arith.constant 8 : i32
    %132 = arith.muli %127, %c8_i32_53 : i32
    %133 = tpu.assume_multiple %132, 8 : i32
    %134 = arith.index_cast %131 : i32 to index
    %c0_54 = arith.constant 0 : index
    %135 = vector.load %arg8[%134, %c0_54] : memref<96x128xf32, #tpu.memory_space<vmem>>, vector<8x128xf32>
    %136 = arith.index_cast %133 : i32 to index
    %c0_55 = arith.constant 0 : index
    %137 = vector.load %arg9[%136, %c0_55] : memref<96x128xf32, #tpu.memory_space<vmem>>, vector<8x128xf32>
    %138 = arith.addf %135, %137 : vector<8x128xf32>
    %139 = arith.addf %138, %129 : vector<8x128xf32>
    %140 = vector.extract_strided_slice %139 {offsets = [0, 0], sizes = [8, 32], strides = [1, 1]} : vector<8x128xf32> to vector<8x32xf32>
    %141 = arith.negf %140 : vector<8x32xf32>
    %142 = math.exp %141 : vector<8x32xf32>
    %cst_56 = arith.constant 1.000000e+00 : f32
    %143 = vector.broadcast %cst_56 : f32 to vector<8x32xf32>
    %144 = arith.addf %143, %142 : vector<8x32xf32>
    %145 = arith.divf %143, %144 : vector<8x32xf32>
    %146 = vector.extract_strided_slice %139 {offsets = [0, 32], sizes = [8, 32], strides = [1, 1]} : vector<8x128xf32> to vector<8x32xf32>
    %147 = arith.negf %146 : vector<8x32xf32>
    %148 = math.exp %147 : vector<8x32xf32>
    %cst_57 = arith.constant 1.000000e+00 : f32
    %149 = vector.broadcast %cst_57 : f32 to vector<8x32xf32>
    %150 = arith.addf %149, %148 : vector<8x32xf32>
    %151 = arith.divf %149, %150 : vector<8x32xf32>
    %152 = vector.extract_strided_slice %139 {offsets = [0, 64], sizes = [8, 32], strides = [1, 1]} : vector<8x128xf32> to vector<8x32xf32>
    %153 = math.tanh %152 : vector<8x32xf32>
    %154 = vector.extract_strided_slice %139 {offsets = [0, 96], sizes = [8, 32], strides = [1, 1]} : vector<8x128xf32> to vector<8x32xf32>
    %155 = arith.negf %154 : vector<8x32xf32>
    %156 = math.exp %155 : vector<8x32xf32>
    %cst_58 = arith.constant 1.000000e+00 : f32
    %157 = vector.broadcast %cst_58 : f32 to vector<8x32xf32>
    %158 = arith.addf %157, %156 : vector<8x32xf32>
    %159 = arith.divf %157, %158 : vector<8x32xf32>
    %160 = arith.mulf %151, %107 : vector<8x32xf32>
    %161 = arith.mulf %145, %153 : vector<8x32xf32>
    %162 = arith.addf %160, %161 : vector<8x32xf32>
    %163 = math.tanh %162 : vector<8x32xf32>
    %164 = arith.mulf %159, %163 : vector<8x32xf32>
    %c12_i32_59 = arith.constant 12 : i32
    %165 = arith.muli %arg0, %c12_i32_59 : i32
    %166 = arith.addi %165, %c2_i32 : i32
    %c0_i32_60 = arith.constant 0 : i32
    %167 = arith.subi %c0_i32_60, %arg0 : i32
    %c12_i32_61 = arith.constant 12 : i32
    %168 = arith.muli %167, %c12_i32_61 : i32
    %169 = arith.addi %168, %127 : i32
    %170 = vector.extract_strided_slice %164 {offsets = [0, 0], sizes = [8, 16], strides = [1, 1]} : vector<8x32xf32> to vector<8x16xf32>
    %171 = arith.truncf %170 : vector<8x16xf32> to vector<8x16xbf16>
    %172 = arith.index_cast %166 : i32 to index
    %c0_62 = arith.constant 0 : index
    %c0_63 = arith.constant 0 : index
    %173 = vector.load %arg7[%172, %c0_62, %c0_63] : memref<12x8x32xbf16, #tpu.memory_space<vmem>>, vector<1x8x16xbf16>
    %174 = vector.shape_cast %173 : vector<1x8x16xbf16> to vector<8x16xbf16>
    %175 = vector.shape_cast %171 : vector<8x16xbf16> to vector<1x8x16xbf16>
    tpu.vector_store %arg7[%172, %c0_62, %c0_63], %175 {strides = array<i32>} : memref<12x8x32xbf16, #tpu.memory_space<vmem>>, vector<1x8x16xbf16>,
    %176 = vector.extract_strided_slice %164 {offsets = [0, 16], sizes = [8, 16], strides = [1, 1]} : vector<8x32xf32> to vector<8x16xf32>
    %177 = arith.truncf %176 : vector<8x16xf32> to vector<8x16xbf16>
    %178 = arith.index_cast %169 : i32 to index
    %c0_64 = arith.constant 0 : index
    %c16_65 = arith.constant 16 : index
    %179 = vector.load %arg7[%178, %c0_64, %c16_65] : memref<12x8x32xbf16, #tpu.memory_space<vmem>>, vector<1x8x16xbf16>
    %180 = vector.shape_cast %179 : vector<1x8x16xbf16> to vector<8x16xbf16>
    %181 = vector.shape_cast %177 : vector<8x16xbf16> to vector<1x8x16xbf16>
    tpu.vector_store %arg7[%178, %c0_64, %c16_65], %181 {strides = array<i32>} : memref<12x8x32xbf16, #tpu.memory_space<vmem>>, vector<1x8x16xbf16>,
    %c3_i32 = arith.constant 3 : i32
    %c11_i32_66 = arith.constant 11 : i32
    %182 = arith.subi %c11_i32_66, %c3_i32 : i32
    %183 = arith.truncf %164 : vector<8x32xf32> to vector<8x32xbf16>
    %cst_67 = arith.constant dense<0.000000e+00> : vector<8x128xf32>
    %184 = tpu.matmul %183, %14, %cst_67 {dimension_numbers = #tpu.dot_dimension_numbers<[1], [0], [0], [1], [0, 0, 1, 1], [], []>} : vector<8x32xbf16>, vector<32x128xbf16>, vector<8x128xf32> -> vector<8x128xf32>
    %c8_i32_68 = arith.constant 8 : i32
    %185 = arith.muli %c3_i32, %c8_i32_68 : i32
    %186 = tpu.assume_multiple %185, 8 : i32
    %c8_i32_69 = arith.constant 8 : i32
    %187 = arith.muli %182, %c8_i32_69 : i32
    %188 = tpu.assume_multiple %187, 8 : i32
    %189 = arith.index_cast %186 : i32 to index
    %c0_70 = arith.constant 0 : index
    %190 = vector.load %arg8[%189, %c0_70] : memref<96x128xf32, #tpu.memory_space<vmem>>, vector<8x128xf32>
    %191 = arith.index_cast %188 : i32 to index
    %c0_71 = arith.constant 0 : index
    %192 = vector.load %arg9[%191, %c0_71] : memref<96x128xf32, #tpu.memory_space<vmem>>, vector<8x128xf32>
    %193 = arith.addf %190, %192 : vector<8x128xf32>
    %194 = arith.addf %193, %184 : vector<8x128xf32>
    %195 = vector.extract_strided_slice %194 {offsets = [0, 0], sizes = [8, 32], strides = [1, 1]} : vector<8x128xf32> to vector<8x32xf32>
    %196 = arith.negf %195 : vector<8x32xf32>
    %197 = math.exp %196 : vector<8x32xf32>
    %cst_72 = arith.constant 1.000000e+00 : f32
    %198 = vector.broadcast %cst_72 : f32 to vector<8x32xf32>
    %199 = arith.addf %198, %197 : vector<8x32xf32>
    %200 = arith.divf %198, %199 : vector<8x32xf32>
    %201 = vector.extract_strided_slice %194 {offsets = [0, 32], sizes = [8, 32], strides = [1, 1]} : vector<8x128xf32> to vector<8x32xf32>
    %202 = arith.negf %201 : vector<8x32xf32>
    %203 = math.exp %202 : vector<8x32xf32>
    %cst_73 = arith.constant 1.000000e+00 : f32
    %204 = vector.broadcast %cst_73 : f32 to vector<8x32xf32>
    %205 = arith.addf %204, %203 : vector<8x32xf32>
    %206 = arith.divf %204, %205 : vector<8x32xf32>
    %207 = vector.extract_strided_slice %194 {offsets = [0, 64], sizes = [8, 32], strides = [1, 1]} : vector<8x128xf32> to vector<8x32xf32>
    %208 = math.tanh %207 : vector<8x32xf32>
    %209 = vector.extract_strided_slice %194 {offsets = [0, 96], sizes = [8, 32], strides = [1, 1]} : vector<8x128xf32> to vector<8x32xf32>
    %210 = arith.negf %209 : vector<8x32xf32>
    %211 = math.exp %210 : vector<8x32xf32>
    %cst_74 = arith.constant 1.000000e+00 : f32
    %212 = vector.broadcast %cst_74 : f32 to vector<8x32xf32>
    %213 = arith.addf %212, %211 : vector<8x32xf32>
    %214 = arith.divf %212, %213 : vector<8x32xf32>
    %215 = arith.mulf %206, %162 : vector<8x32xf32>
    %216 = arith.mulf %200, %208 : vector<8x32xf32>
    %217 = arith.addf %215, %216 : vector<8x32xf32>
    %218 = math.tanh %217 : vector<8x32xf32>
    %219 = arith.mulf %214, %218 : vector<8x32xf32>
    %c12_i32_75 = arith.constant 12 : i32
    %220 = arith.muli %arg0, %c12_i32_75 : i32
    %221 = arith.addi %220, %c3_i32 : i32
    %c0_i32_76 = arith.constant 0 : i32
    %222 = arith.subi %c0_i32_76, %arg0 : i32
    %c12_i32_77 = arith.constant 12 : i32
    %223 = arith.muli %222, %c12_i32_77 : i32
    %224 = arith.addi %223, %182 : i32
    %225 = vector.extract_strided_slice %219 {offsets = [0, 0], sizes = [8, 16], strides = [1, 1]} : vector<8x32xf32> to vector<8x16xf32>
    %226 = arith.truncf %225 : vector<8x16xf32> to vector<8x16xbf16>
    %227 = arith.index_cast %221 : i32 to index
    %c0_78 = arith.constant 0 : index
    %c0_79 = arith.constant 0 : index
    %228 = vector.load %arg7[%227, %c0_78, %c0_79] : memref<12x8x32xbf16, #tpu.memory_space<vmem>>, vector<1x8x16xbf16>
    %229 = vector.shape_cast %228 : vector<1x8x16xbf16> to vector<8x16xbf16>
    %230 = vector.shape_cast %226 : vector<8x16xbf16> to vector<1x8x16xbf16>
    tpu.vector_store %arg7[%227, %c0_78, %c0_79], %230 {strides = array<i32>} : memref<12x8x32xbf16, #tpu.memory_space<vmem>>, vector<1x8x16xbf16>,
    %231 = vector.extract_strided_slice %219 {offsets = [0, 16], sizes = [8, 16], strides = [1, 1]} : vector<8x32xf32> to vector<8x16xf32>
    %232 = arith.truncf %231 : vector<8x16xf32> to vector<8x16xbf16>
    %233 = arith.index_cast %224 : i32 to index
    %c0_80 = arith.constant 0 : index
    %c16_81 = arith.constant 16 : index
    %234 = vector.load %arg7[%233, %c0_80, %c16_81] : memref<12x8x32xbf16, #tpu.memory_space<vmem>>, vector<1x8x16xbf16>
    %235 = vector.shape_cast %234 : vector<1x8x16xbf16> to vector<8x16xbf16>
    %236 = vector.shape_cast %232 : vector<8x16xbf16> to vector<1x8x16xbf16>
    tpu.vector_store %arg7[%233, %c0_80, %c16_81], %236 {strides = array<i32>} : memref<12x8x32xbf16, #tpu.memory_space<vmem>>, vector<1x8x16xbf16>,
    %c4_i32 = arith.constant 4 : i32
    %c11_i32_82 = arith.constant 11 : i32
    %237 = arith.subi %c11_i32_82, %c4_i32 : i32
    %238 = arith.truncf %219 : vector<8x32xf32> to vector<8x32xbf16>
    %cst_83 = arith.constant dense<0.000000e+00> : vector<8x128xf32>
    %239 = tpu.matmul %238, %14, %cst_83 {dimension_numbers = #tpu.dot_dimension_numbers<[1], [0], [0], [1], [0, 0, 1, 1], [], []>} : vector<8x32xbf16>, vector<32x128xbf16>, vector<8x128xf32> -> vector<8x128xf32>
    %c8_i32_84 = arith.constant 8 : i32
    %240 = arith.muli %c4_i32, %c8_i32_84 : i32
    %241 = tpu.assume_multiple %240, 8 : i32
    %c8_i32_85 = arith.constant 8 : i32
    %242 = arith.muli %237, %c8_i32_85 : i32
    %243 = tpu.assume_multiple %242, 8 : i32
    %244 = arith.index_cast %241 : i32 to index
    %c0_86 = arith.constant 0 : index
    %245 = vector.load %arg8[%244, %c0_86] : memref<96x128xf32, #tpu.memory_space<vmem>>, vector<8x128xf32>
    %246 = arith.index_cast %243 : i32 to index
    %c0_87 = arith.constant 0 : index
    %247 = vector.load %arg9[%246, %c0_87] : memref<96x128xf32, #tpu.memory_space<vmem>>, vector<8x128xf32>
    %248 = arith.addf %245, %247 : vector<8x128xf32>
    %249 = arith.addf %248, %239 : vector<8x128xf32>
    %250 = vector.extract_strided_slice %249 {offsets = [0, 0], sizes = [8, 32], strides = [1, 1]} : vector<8x128xf32> to vector<8x32xf32>
    %251 = arith.negf %250 : vector<8x32xf32>
    %252 = math.exp %251 : vector<8x32xf32>
    %cst_88 = arith.constant 1.000000e+00 : f32
    %253 = vector.broadcast %cst_88 : f32 to vector<8x32xf32>
    %254 = arith.addf %253, %252 : vector<8x32xf32>
    %255 = arith.divf %253, %254 : vector<8x32xf32>
    %256 = vector.extract_strided_slice %249 {offsets = [0, 32], sizes = [8, 32], strides = [1, 1]} : vector<8x128xf32> to vector<8x32xf32>
    %257 = arith.negf %256 : vector<8x32xf32>
    %258 = math.exp %257 : vector<8x32xf32>
    %cst_89 = arith.constant 1.000000e+00 : f32
    %259 = vector.broadcast %cst_89 : f32 to vector<8x32xf32>
    %260 = arith.addf %259, %258 : vector<8x32xf32>
    %261 = arith.divf %259, %260 : vector<8x32xf32>
    %262 = vector.extract_strided_slice %249 {offsets = [0, 64], sizes = [8, 32], strides = [1, 1]} : vector<8x128xf32> to vector<8x32xf32>
    %263 = math.tanh %262 : vector<8x32xf32>
    %264 = vector.extract_strided_slice %249 {offsets = [0, 96], sizes = [8, 32], strides = [1, 1]} : vector<8x128xf32> to vector<8x32xf32>
    %265 = arith.negf %264 : vector<8x32xf32>
    %266 = math.exp %265 : vector<8x32xf32>
    %cst_90 = arith.constant 1.000000e+00 : f32
    %267 = vector.broadcast %cst_90 : f32 to vector<8x32xf32>
    %268 = arith.addf %267, %266 : vector<8x32xf32>
    %269 = arith.divf %267, %268 : vector<8x32xf32>
    %270 = arith.mulf %261, %217 : vector<8x32xf32>
    %271 = arith.mulf %255, %263 : vector<8x32xf32>
    %272 = arith.addf %270, %271 : vector<8x32xf32>
    %273 = math.tanh %272 : vector<8x32xf32>
    %274 = arith.mulf %269, %273 : vector<8x32xf32>
    %c12_i32_91 = arith.constant 12 : i32
    %275 = arith.muli %arg0, %c12_i32_91 : i32
    %276 = arith.addi %275, %c4_i32 : i32
    %c0_i32_92 = arith.constant 0 : i32
    %277 = arith.subi %c0_i32_92, %arg0 : i32
    %c12_i32_93 = arith.constant 12 : i32
    %278 = arith.muli %277, %c12_i32_93 : i32
    %279 = arith.addi %278, %237 : i32
    %280 = vector.extract_strided_slice %274 {offsets = [0, 0], sizes = [8, 16], strides = [1, 1]} : vector<8x32xf32> to vector<8x16xf32>
    %281 = arith.truncf %280 : vector<8x16xf32> to vector<8x16xbf16>
    %282 = arith.index_cast %276 : i32 to index
    %c0_94 = arith.constant 0 : index
    %c0_95 = arith.constant 0 : index
    %283 = vector.load %arg7[%282, %c0_94, %c0_95] : memref<12x8x32xbf16, #tpu.memory_space<vmem>>, vector<1x8x16xbf16>
    %284 = vector.shape_cast %283 : vector<1x8x16xbf16> to vector<8x16xbf16>
    %285 = vector.shape_cast %281 : vector<8x16xbf16> to vector<1x8x16xbf16>
    tpu.vector_store %arg7[%282, %c0_94, %c0_95], %285 {strides = array<i32>} : memref<12x8x32xbf16, #tpu.memory_space<vmem>>, vector<1x8x16xbf16>,
    %286 = vector.extract_strided_slice %274 {offsets = [0, 16], sizes = [8, 16], strides = [1, 1]} : vector<8x32xf32> to vector<8x16xf32>
    %287 = arith.truncf %286 : vector<8x16xf32> to vector<8x16xbf16>
    %288 = arith.index_cast %279 : i32 to index
    %c0_96 = arith.constant 0 : index
    %c16_97 = arith.constant 16 : index
    %289 = vector.load %arg7[%288, %c0_96, %c16_97] : memref<12x8x32xbf16, #tpu.memory_space<vmem>>, vector<1x8x16xbf16>
    %290 = vector.shape_cast %289 : vector<1x8x16xbf16> to vector<8x16xbf16>
    %291 = vector.shape_cast %287 : vector<8x16xbf16> to vector<1x8x16xbf16>
    tpu.vector_store %arg7[%288, %c0_96, %c16_97], %291 {strides = array<i32>} : memref<12x8x32xbf16, #tpu.memory_space<vmem>>, vector<1x8x16xbf16>,
    %c5_i32 = arith.constant 5 : i32
    %c11_i32_98 = arith.constant 11 : i32
    %292 = arith.subi %c11_i32_98, %c5_i32 : i32
    %293 = arith.truncf %274 : vector<8x32xf32> to vector<8x32xbf16>
    %cst_99 = arith.constant dense<0.000000e+00> : vector<8x128xf32>
    %294 = tpu.matmul %293, %14, %cst_99 {dimension_numbers = #tpu.dot_dimension_numbers<[1], [0], [0], [1], [0, 0, 1, 1], [], []>} : vector<8x32xbf16>, vector<32x128xbf16>, vector<8x128xf32> -> vector<8x128xf32>
    %c8_i32_100 = arith.constant 8 : i32
    %295 = arith.muli %c5_i32, %c8_i32_100 : i32
    %296 = tpu.assume_multiple %295, 8 : i32
    %c8_i32_101 = arith.constant 8 : i32
    %297 = arith.muli %292, %c8_i32_101 : i32
    %298 = tpu.assume_multiple %297, 8 : i32
    %299 = arith.index_cast %296 : i32 to index
    %c0_102 = arith.constant 0 : index
    %300 = vector.load %arg8[%299, %c0_102] : memref<96x128xf32, #tpu.memory_space<vmem>>, vector<8x128xf32>
    %301 = arith.index_cast %298 : i32 to index
    %c0_103 = arith.constant 0 : index
    %302 = vector.load %arg9[%301, %c0_103] : memref<96x128xf32, #tpu.memory_space<vmem>>, vector<8x128xf32>
    %303 = arith.addf %300, %302 : vector<8x128xf32>
    %304 = arith.addf %303, %294 : vector<8x128xf32>
    %305 = vector.extract_strided_slice %304 {offsets = [0, 0], sizes = [8, 32], strides = [1, 1]} : vector<8x128xf32> to vector<8x32xf32>
    %306 = arith.negf %305 : vector<8x32xf32>
    %307 = math.exp %306 : vector<8x32xf32>
    %cst_104 = arith.constant 1.000000e+00 : f32
    %308 = vector.broadcast %cst_104 : f32 to vector<8x32xf32>
    %309 = arith.addf %308, %307 : vector<8x32xf32>
    %310 = arith.divf %308, %309 : vector<8x32xf32>
    %311 = vector.extract_strided_slice %304 {offsets = [0, 32], sizes = [8, 32], strides = [1, 1]} : vector<8x128xf32> to vector<8x32xf32>
    %312 = arith.negf %311 : vector<8x32xf32>
    %313 = math.exp %312 : vector<8x32xf32>
    %cst_105 = arith.constant 1.000000e+00 : f32
    %314 = vector.broadcast %cst_105 : f32 to vector<8x32xf32>
    %315 = arith.addf %314, %313 : vector<8x32xf32>
    %316 = arith.divf %314, %315 : vector<8x32xf32>
    %317 = vector.extract_strided_slice %304 {offsets = [0, 64], sizes = [8, 32], strides = [1, 1]} : vector<8x128xf32> to vector<8x32xf32>
    %318 = math.tanh %317 : vector<8x32xf32>
    %319 = vector.extract_strided_slice %304 {offsets = [0, 96], sizes = [8, 32], strides = [1, 1]} : vector<8x128xf32> to vector<8x32xf32>
    %320 = arith.negf %319 : vector<8x32xf32>
    %321 = math.exp %320 : vector<8x32xf32>
    %cst_106 = arith.constant 1.000000e+00 : f32
    %322 = vector.broadcast %cst_106 : f32 to vector<8x32xf32>
    %323 = arith.addf %322, %321 : vector<8x32xf32>
    %324 = arith.divf %322, %323 : vector<8x32xf32>
    %325 = arith.mulf %316, %272 : vector<8x32xf32>
    %326 = arith.mulf %310, %318 : vector<8x32xf32>
    %327 = arith.addf %325, %326 : vector<8x32xf32>
    %328 = math.tanh %327 : vector<8x32xf32>
    %329 = arith.mulf %324, %328 : vector<8x32xf32>
    %c12_i32_107 = arith.constant 12 : i32
    %330 = arith.muli %arg0, %c12_i32_107 : i32
    %331 = arith.addi %330, %c5_i32 : i32
    %c0_i32_108 = arith.constant 0 : i32
    %332 = arith.subi %c0_i32_108, %arg0 : i32
    %c12_i32_109 = arith.constant 12 : i32
    %333 = arith.muli %332, %c12_i32_109 : i32
    %334 = arith.addi %333, %292 : i32
    %335 = vector.extract_strided_slice %329 {offsets = [0, 0], sizes = [8, 16], strides = [1, 1]} : vector<8x32xf32> to vector<8x16xf32>
    %336 = arith.truncf %335 : vector<8x16xf32> to vector<8x16xbf16>
    %337 = arith.index_cast %331 : i32 to index
    %c0_110 = arith.constant 0 : index
    %c0_111 = arith.constant 0 : index
    %338 = vector.load %arg7[%337, %c0_110, %c0_111] : memref<12x8x32xbf16, #tpu.memory_space<vmem>>, vector<1x8x16xbf16>
    %339 = vector.shape_cast %338 : vector<1x8x16xbf16> to vector<8x16xbf16>
    %340 = vector.shape_cast %336 : vector<8x16xbf16> to vector<1x8x16xbf16>
    tpu.vector_store %arg7[%337, %c0_110, %c0_111], %340 {strides = array<i32>} : memref<12x8x32xbf16, #tpu.memory_space<vmem>>, vector<1x8x16xbf16>,
    %341 = vector.extract_strided_slice %329 {offsets = [0, 16], sizes = [8, 16], strides = [1, 1]} : vector<8x32xf32> to vector<8x16xf32>
    %342 = arith.truncf %341 : vector<8x16xf32> to vector<8x16xbf16>
    %343 = arith.index_cast %334 : i32 to index
    %c0_112 = arith.constant 0 : index
    %c16_113 = arith.constant 16 : index
    %344 = vector.load %arg7[%343, %c0_112, %c16_113] : memref<12x8x32xbf16, #tpu.memory_space<vmem>>, vector<1x8x16xbf16>
    %345 = vector.shape_cast %344 : vector<1x8x16xbf16> to vector<8x16xbf16>
    %346 = vector.shape_cast %342 : vector<8x16xbf16> to vector<1x8x16xbf16>
    tpu.vector_store %arg7[%343, %c0_112, %c16_113], %346 {strides = array<i32>} : memref<12x8x32xbf16, #tpu.memory_space<vmem>>, vector<1x8x16xbf16>,
    %c6_i32 = arith.constant 6 : i32
    %c11_i32_114 = arith.constant 11 : i32
    %347 = arith.subi %c11_i32_114, %c6_i32 : i32
    %348 = arith.truncf %329 : vector<8x32xf32> to vector<8x32xbf16>
    %cst_115 = arith.constant dense<0.000000e+00> : vector<8x128xf32>
    %349 = tpu.matmul %348, %14, %cst_115 {dimension_numbers = #tpu.dot_dimension_numbers<[1], [0], [0], [1], [0, 0, 1, 1], [], []>} : vector<8x32xbf16>, vector<32x128xbf16>, vector<8x128xf32> -> vector<8x128xf32>
    %c8_i32_116 = arith.constant 8 : i32
    %350 = arith.muli %c6_i32, %c8_i32_116 : i32
    %351 = tpu.assume_multiple %350, 8 : i32
    %c8_i32_117 = arith.constant 8 : i32
    %352 = arith.muli %347, %c8_i32_117 : i32
    %353 = tpu.assume_multiple %352, 8 : i32
    %354 = arith.index_cast %351 : i32 to index
    %c0_118 = arith.constant 0 : index
    %355 = vector.load %arg8[%354, %c0_118] : memref<96x128xf32, #tpu.memory_space<vmem>>, vector<8x128xf32>
    %356 = arith.index_cast %353 : i32 to index
    %c0_119 = arith.constant 0 : index
    %357 = vector.load %arg9[%356, %c0_119] : memref<96x128xf32, #tpu.memory_space<vmem>>, vector<8x128xf32>
    %358 = arith.addf %355, %357 : vector<8x128xf32>
    %359 = arith.addf %358, %349 : vector<8x128xf32>
    %360 = vector.extract_strided_slice %359 {offsets = [0, 0], sizes = [8, 32], strides = [1, 1]} : vector<8x128xf32> to vector<8x32xf32>
    %361 = arith.negf %360 : vector<8x32xf32>
    %362 = math.exp %361 : vector<8x32xf32>
    %cst_120 = arith.constant 1.000000e+00 : f32
    %363 = vector.broadcast %cst_120 : f32 to vector<8x32xf32>
    %364 = arith.addf %363, %362 : vector<8x32xf32>
    %365 = arith.divf %363, %364 : vector<8x32xf32>
    %366 = vector.extract_strided_slice %359 {offsets = [0, 32], sizes = [8, 32], strides = [1, 1]} : vector<8x128xf32> to vector<8x32xf32>
    %367 = arith.negf %366 : vector<8x32xf32>
    %368 = math.exp %367 : vector<8x32xf32>
    %cst_121 = arith.constant 1.000000e+00 : f32
    %369 = vector.broadcast %cst_121 : f32 to vector<8x32xf32>
    %370 = arith.addf %369, %368 : vector<8x32xf32>
    %371 = arith.divf %369, %370 : vector<8x32xf32>
    %372 = vector.extract_strided_slice %359 {offsets = [0, 64], sizes = [8, 32], strides = [1, 1]} : vector<8x128xf32> to vector<8x32xf32>
    %373 = math.tanh %372 : vector<8x32xf32>
    %374 = vector.extract_strided_slice %359 {offsets = [0, 96], sizes = [8, 32], strides = [1, 1]} : vector<8x128xf32> to vector<8x32xf32>
    %375 = arith.negf %374 : vector<8x32xf32>
    %376 = math.exp %375 : vector<8x32xf32>
    %cst_122 = arith.constant 1.000000e+00 : f32
    %377 = vector.broadcast %cst_122 : f32 to vector<8x32xf32>
    %378 = arith.addf %377, %376 : vector<8x32xf32>
    %379 = arith.divf %377, %378 : vector<8x32xf32>
    %380 = arith.mulf %371, %327 : vector<8x32xf32>
    %381 = arith.mulf %365, %373 : vector<8x32xf32>
    %382 = arith.addf %380, %381 : vector<8x32xf32>
    %383 = math.tanh %382 : vector<8x32xf32>
    %384 = arith.mulf %379, %383 : vector<8x32xf32>
    %c12_i32_123 = arith.constant 12 : i32
    %385 = arith.muli %arg0, %c12_i32_123 : i32
    %386 = arith.addi %385, %c6_i32 : i32
    %c0_i32_124 = arith.constant 0 : i32
    %387 = arith.subi %c0_i32_124, %arg0 : i32
    %c12_i32_125 = arith.constant 12 : i32
    %388 = arith.muli %387, %c12_i32_125 : i32
    %389 = arith.addi %388, %347 : i32
    %390 = vector.extract_strided_slice %384 {offsets = [0, 0], sizes = [8, 16], strides = [1, 1]} : vector<8x32xf32> to vector<8x16xf32>
    %391 = arith.truncf %390 : vector<8x16xf32> to vector<8x16xbf16>
    %392 = arith.index_cast %386 : i32 to index
    %c0_126 = arith.constant 0 : index
    %c0_127 = arith.constant 0 : index
    %393 = vector.load %arg7[%392, %c0_126, %c0_127] : memref<12x8x32xbf16, #tpu.memory_space<vmem>>, vector<1x8x16xbf16>
    %394 = vector.shape_cast %393 : vector<1x8x16xbf16> to vector<8x16xbf16>
    %395 = vector.shape_cast %391 : vector<8x16xbf16> to vector<1x8x16xbf16>
    tpu.vector_store %arg7[%392, %c0_126, %c0_127], %395 {strides = array<i32>} : memref<12x8x32xbf16, #tpu.memory_space<vmem>>, vector<1x8x16xbf16>,
    %396 = vector.extract_strided_slice %384 {offsets = [0, 16], sizes = [8, 16], strides = [1, 1]} : vector<8x32xf32> to vector<8x16xf32>
    %397 = arith.truncf %396 : vector<8x16xf32> to vector<8x16xbf16>
    %398 = arith.index_cast %389 : i32 to index
    %c0_128 = arith.constant 0 : index
    %c16_129 = arith.constant 16 : index
    %399 = vector.load %arg7[%398, %c0_128, %c16_129] : memref<12x8x32xbf16, #tpu.memory_space<vmem>>, vector<1x8x16xbf16>
    %400 = vector.shape_cast %399 : vector<1x8x16xbf16> to vector<8x16xbf16>
    %401 = vector.shape_cast %397 : vector<8x16xbf16> to vector<1x8x16xbf16>
    tpu.vector_store %arg7[%398, %c0_128, %c16_129], %401 {strides = array<i32>} : memref<12x8x32xbf16, #tpu.memory_space<vmem>>, vector<1x8x16xbf16>,
    %c7_i32 = arith.constant 7 : i32
    %c11_i32_130 = arith.constant 11 : i32
    %402 = arith.subi %c11_i32_130, %c7_i32 : i32
    %403 = arith.truncf %384 : vector<8x32xf32> to vector<8x32xbf16>
    %cst_131 = arith.constant dense<0.000000e+00> : vector<8x128xf32>
    %404 = tpu.matmul %403, %14, %cst_131 {dimension_numbers = #tpu.dot_dimension_numbers<[1], [0], [0], [1], [0, 0, 1, 1], [], []>} : vector<8x32xbf16>, vector<32x128xbf16>, vector<8x128xf32> -> vector<8x128xf32>
    %c8_i32_132 = arith.constant 8 : i32
    %405 = arith.muli %c7_i32, %c8_i32_132 : i32
    %406 = tpu.assume_multiple %405, 8 : i32
    %c8_i32_133 = arith.constant 8 : i32
    %407 = arith.muli %402, %c8_i32_133 : i32
    %408 = tpu.assume_multiple %407, 8 : i32
    %409 = arith.index_cast %406 : i32 to index
    %c0_134 = arith.constant 0 : index
    %410 = vector.load %arg8[%409, %c0_134] : memref<96x128xf32, #tpu.memory_space<vmem>>, vector<8x128xf32>
    %411 = arith.index_cast %408 : i32 to index
    %c0_135 = arith.constant 0 : index
    %412 = vector.load %arg9[%411, %c0_135] : memref<96x128xf32, #tpu.memory_space<vmem>>, vector<8x128xf32>
    %413 = arith.addf %410, %412 : vector<8x128xf32>
    %414 = arith.addf %413, %404 : vector<8x128xf32>
    %415 = vector.extract_strided_slice %414 {offsets = [0, 0], sizes = [8, 32], strides = [1, 1]} : vector<8x128xf32> to vector<8x32xf32>
    %416 = arith.negf %415 : vector<8x32xf32>
    %417 = math.exp %416 : vector<8x32xf32>
    %cst_136 = arith.constant 1.000000e+00 : f32
    %418 = vector.broadcast %cst_136 : f32 to vector<8x32xf32>
    %419 = arith.addf %418, %417 : vector<8x32xf32>
    %420 = arith.divf %418, %419 : vector<8x32xf32>
    %421 = vector.extract_strided_slice %414 {offsets = [0, 32], sizes = [8, 32], strides = [1, 1]} : vector<8x128xf32> to vector<8x32xf32>
    %422 = arith.negf %421 : vector<8x32xf32>
    %423 = math.exp %422 : vector<8x32xf32>
    %cst_137 = arith.constant 1.000000e+00 : f32
    %424 = vector.broadcast %cst_137 : f32 to vector<8x32xf32>
    %425 = arith.addf %424, %423 : vector<8x32xf32>
    %426 = arith.divf %424, %425 : vector<8x32xf32>
    %427 = vector.extract_strided_slice %414 {offsets = [0, 64], sizes = [8, 32], strides = [1, 1]} : vector<8x128xf32> to vector<8x32xf32>
    %428 = math.tanh %427 : vector<8x32xf32>
    %429 = vector.extract_strided_slice %414 {offsets = [0, 96], sizes = [8, 32], strides = [1, 1]} : vector<8x128xf32> to vector<8x32xf32>
    %430 = arith.negf %429 : vector<8x32xf32>
    %431 = math.exp %430 : vector<8x32xf32>
    %cst_138 = arith.constant 1.000000e+00 : f32
    %432 = vector.broadcast %cst_138 : f32 to vector<8x32xf32>
    %433 = arith.addf %432, %431 : vector<8x32xf32>
    %434 = arith.divf %432, %433 : vector<8x32xf32>
    %435 = arith.mulf %426, %382 : vector<8x32xf32>
    %436 = arith.mulf %420, %428 : vector<8x32xf32>
    %437 = arith.addf %435, %436 : vector<8x32xf32>
    %438 = math.tanh %437 : vector<8x32xf32>
    %439 = arith.mulf %434, %438 : vector<8x32xf32>
    %c12_i32_139 = arith.constant 12 : i32
    %440 = arith.muli %arg0, %c12_i32_139 : i32
    %441 = arith.addi %440, %c7_i32 : i32
    %c0_i32_140 = arith.constant 0 : i32
    %442 = arith.subi %c0_i32_140, %arg0 : i32
    %c12_i32_141 = arith.constant 12 : i32
    %443 = arith.muli %442, %c12_i32_141 : i32
    %444 = arith.addi %443, %402 : i32
    %445 = vector.extract_strided_slice %439 {offsets = [0, 0], sizes = [8, 16], strides = [1, 1]} : vector<8x32xf32> to vector<8x16xf32>
    %446 = arith.truncf %445 : vector<8x16xf32> to vector<8x16xbf16>
    %447 = arith.index_cast %441 : i32 to index
    %c0_142 = arith.constant 0 : index
    %c0_143 = arith.constant 0 : index
    %448 = vector.load %arg7[%447, %c0_142, %c0_143] : memref<12x8x32xbf16, #tpu.memory_space<vmem>>, vector<1x8x16xbf16>
    %449 = vector.shape_cast %448 : vector<1x8x16xbf16> to vector<8x16xbf16>
    %450 = vector.shape_cast %446 : vector<8x16xbf16> to vector<1x8x16xbf16>
    tpu.vector_store %arg7[%447, %c0_142, %c0_143], %450 {strides = array<i32>} : memref<12x8x32xbf16, #tpu.memory_space<vmem>>, vector<1x8x16xbf16>,
    %451 = vector.extract_strided_slice %439 {offsets = [0, 16], sizes = [8, 16], strides = [1, 1]} : vector<8x32xf32> to vector<8x16xf32>
    %452 = arith.truncf %451 : vector<8x16xf32> to vector<8x16xbf16>
    %453 = arith.index_cast %444 : i32 to index
    %c0_144 = arith.constant 0 : index
    %c16_145 = arith.constant 16 : index
    %454 = vector.load %arg7[%453, %c0_144, %c16_145] : memref<12x8x32xbf16, #tpu.memory_space<vmem>>, vector<1x8x16xbf16>
    %455 = vector.shape_cast %454 : vector<1x8x16xbf16> to vector<8x16xbf16>
    %456 = vector.shape_cast %452 : vector<8x16xbf16> to vector<1x8x16xbf16>
    tpu.vector_store %arg7[%453, %c0_144, %c16_145], %456 {strides = array<i32>} : memref<12x8x32xbf16, #tpu.memory_space<vmem>>, vector<1x8x16xbf16>,
    %c8_i32_146 = arith.constant 8 : i32
    %c11_i32_147 = arith.constant 11 : i32
    %457 = arith.subi %c11_i32_147, %c8_i32_146 : i32
    %458 = arith.truncf %439 : vector<8x32xf32> to vector<8x32xbf16>
    %cst_148 = arith.constant dense<0.000000e+00> : vector<8x128xf32>
    %459 = tpu.matmul %458, %14, %cst_148 {dimension_numbers = #tpu.dot_dimension_numbers<[1], [0], [0], [1], [0, 0, 1, 1], [], []>} : vector<8x32xbf16>, vector<32x128xbf16>, vector<8x128xf32> -> vector<8x128xf32>
    %c8_i32_149 = arith.constant 8 : i32
    %460 = arith.muli %c8_i32_146, %c8_i32_149 : i32
    %461 = tpu.assume_multiple %460, 8 : i32
    %c8_i32_150 = arith.constant 8 : i32
    %462 = arith.muli %457, %c8_i32_150 : i32
    %463 = tpu.assume_multiple %462, 8 : i32
    %464 = arith.index_cast %461 : i32 to index
    %c0_151 = arith.constant 0 : index
    %465 = vector.load %arg8[%464, %c0_151] : memref<96x128xf32, #tpu.memory_space<vmem>>, vector<8x128xf32>
    %466 = arith.index_cast %463 : i32 to index
    %c0_152 = arith.constant 0 : index
    %467 = vector.load %arg9[%466, %c0_152] : memref<96x128xf32, #tpu.memory_space<vmem>>, vector<8x128xf32>
    %468 = arith.addf %465, %467 : vector<8x128xf32>
    %469 = arith.addf %468, %459 : vector<8x128xf32>
    %470 = vector.extract_strided_slice %469 {offsets = [0, 0], sizes = [8, 32], strides = [1, 1]} : vector<8x128xf32> to vector<8x32xf32>
    %471 = arith.negf %470 : vector<8x32xf32>
    %472 = math.exp %471 : vector<8x32xf32>
    %cst_153 = arith.constant 1.000000e+00 : f32
    %473 = vector.broadcast %cst_153 : f32 to vector<8x32xf32>
    %474 = arith.addf %473, %472 : vector<8x32xf32>
    %475 = arith.divf %473, %474 : vector<8x32xf32>
    %476 = vector.extract_strided_slice %469 {offsets = [0, 32], sizes = [8, 32], strides = [1, 1]} : vector<8x128xf32> to vector<8x32xf32>
    %477 = arith.negf %476 : vector<8x32xf32>
    %478 = math.exp %477 : vector<8x32xf32>
    %cst_154 = arith.constant 1.000000e+00 : f32
    %479 = vector.broadcast %cst_154 : f32 to vector<8x32xf32>
    %480 = arith.addf %479, %478 : vector<8x32xf32>
    %481 = arith.divf %479, %480 : vector<8x32xf32>
    %482 = vector.extract_strided_slice %469 {offsets = [0, 64], sizes = [8, 32], strides = [1, 1]} : vector<8x128xf32> to vector<8x32xf32>
    %483 = math.tanh %482 : vector<8x32xf32>
    %484 = vector.extract_strided_slice %469 {offsets = [0, 96], sizes = [8, 32], strides = [1, 1]} : vector<8x128xf32> to vector<8x32xf32>
    %485 = arith.negf %484 : vector<8x32xf32>
    %486 = math.exp %485 : vector<8x32xf32>
    %cst_155 = arith.constant 1.000000e+00 : f32
    %487 = vector.broadcast %cst_155 : f32 to vector<8x32xf32>
    %488 = arith.addf %487, %486 : vector<8x32xf32>
    %489 = arith.divf %487, %488 : vector<8x32xf32>
    %490 = arith.mulf %481, %437 : vector<8x32xf32>
    %491 = arith.mulf %475, %483 : vector<8x32xf32>
    %492 = arith.addf %490, %491 : vector<8x32xf32>
    %493 = math.tanh %492 : vector<8x32xf32>
    %494 = arith.mulf %489, %493 : vector<8x32xf32>
    %c12_i32_156 = arith.constant 12 : i32
    %495 = arith.muli %arg0, %c12_i32_156 : i32
    %496 = arith.addi %495, %c8_i32_146 : i32
    %c0_i32_157 = arith.constant 0 : i32
    %497 = arith.subi %c0_i32_157, %arg0 : i32
    %c12_i32_158 = arith.constant 12 : i32
    %498 = arith.muli %497, %c12_i32_158 : i32
    %499 = arith.addi %498, %457 : i32
    %500 = vector.extract_strided_slice %494 {offsets = [0, 0], sizes = [8, 16], strides = [1, 1]} : vector<8x32xf32> to vector<8x16xf32>
    %501 = arith.truncf %500 : vector<8x16xf32> to vector<8x16xbf16>
    %502 = arith.index_cast %496 : i32 to index
    %c0_159 = arith.constant 0 : index
    %c0_160 = arith.constant 0 : index
    %503 = vector.load %arg7[%502, %c0_159, %c0_160] : memref<12x8x32xbf16, #tpu.memory_space<vmem>>, vector<1x8x16xbf16>
    %504 = vector.shape_cast %503 : vector<1x8x16xbf16> to vector<8x16xbf16>
    %505 = vector.shape_cast %501 : vector<8x16xbf16> to vector<1x8x16xbf16>
    tpu.vector_store %arg7[%502, %c0_159, %c0_160], %505 {strides = array<i32>} : memref<12x8x32xbf16, #tpu.memory_space<vmem>>, vector<1x8x16xbf16>,
    %506 = vector.extract_strided_slice %494 {offsets = [0, 16], sizes = [8, 16], strides = [1, 1]} : vector<8x32xf32> to vector<8x16xf32>
    %507 = arith.truncf %506 : vector<8x16xf32> to vector<8x16xbf16>
    %508 = arith.index_cast %499 : i32 to index
    %c0_161 = arith.constant 0 : index
    %c16_162 = arith.constant 16 : index
    %509 = vector.load %arg7[%508, %c0_161, %c16_162] : memref<12x8x32xbf16, #tpu.memory_space<vmem>>, vector<1x8x16xbf16>
    %510 = vector.shape_cast %509 : vector<1x8x16xbf16> to vector<8x16xbf16>
    %511 = vector.shape_cast %507 : vector<8x16xbf16> to vector<1x8x16xbf16>
    tpu.vector_store %arg7[%508, %c0_161, %c16_162], %511 {strides = array<i32>} : memref<12x8x32xbf16, #tpu.memory_space<vmem>>, vector<1x8x16xbf16>,
    %c9_i32 = arith.constant 9 : i32
    %c11_i32_163 = arith.constant 11 : i32
    %512 = arith.subi %c11_i32_163, %c9_i32 : i32
    %513 = arith.truncf %494 : vector<8x32xf32> to vector<8x32xbf16>
    %cst_164 = arith.constant dense<0.000000e+00> : vector<8x128xf32>
    %514 = tpu.matmul %513, %14, %cst_164 {dimension_numbers = #tpu.dot_dimension_numbers<[1], [0], [0], [1], [0, 0, 1, 1], [], []>} : vector<8x32xbf16>, vector<32x128xbf16>, vector<8x128xf32> -> vector<8x128xf32>
    %c8_i32_165 = arith.constant 8 : i32
    %515 = arith.muli %c9_i32, %c8_i32_165 : i32
    %516 = tpu.assume_multiple %515, 8 : i32
    %c8_i32_166 = arith.constant 8 : i32
    %517 = arith.muli %512, %c8_i32_166 : i32
    %518 = tpu.assume_multiple %517, 8 : i32
    %519 = arith.index_cast %516 : i32 to index
    %c0_167 = arith.constant 0 : index
    %520 = vector.load %arg8[%519, %c0_167] : memref<96x128xf32, #tpu.memory_space<vmem>>, vector<8x128xf32>
    %521 = arith.index_cast %518 : i32 to index
    %c0_168 = arith.constant 0 : index
    %522 = vector.load %arg9[%521, %c0_168] : memref<96x128xf32, #tpu.memory_space<vmem>>, vector<8x128xf32>
    %523 = arith.addf %520, %522 : vector<8x128xf32>
    %524 = arith.addf %523, %514 : vector<8x128xf32>
    %525 = vector.extract_strided_slice %524 {offsets = [0, 0], sizes = [8, 32], strides = [1, 1]} : vector<8x128xf32> to vector<8x32xf32>
    %526 = arith.negf %525 : vector<8x32xf32>
    %527 = math.exp %526 : vector<8x32xf32>
    %cst_169 = arith.constant 1.000000e+00 : f32
    %528 = vector.broadcast %cst_169 : f32 to vector<8x32xf32>
    %529 = arith.addf %528, %527 : vector<8x32xf32>
    %530 = arith.divf %528, %529 : vector<8x32xf32>
    %531 = vector.extract_strided_slice %524 {offsets = [0, 32], sizes = [8, 32], strides = [1, 1]} : vector<8x128xf32> to vector<8x32xf32>
    %532 = arith.negf %531 : vector<8x32xf32>
    %533 = math.exp %532 : vector<8x32xf32>
    %cst_170 = arith.constant 1.000000e+00 : f32
    %534 = vector.broadcast %cst_170 : f32 to vector<8x32xf32>
    %535 = arith.addf %534, %533 : vector<8x32xf32>
    %536 = arith.divf %534, %535 : vector<8x32xf32>
    %537 = vector.extract_strided_slice %524 {offsets = [0, 64], sizes = [8, 32], strides = [1, 1]} : vector<8x128xf32> to vector<8x32xf32>
    %538 = math.tanh %537 : vector<8x32xf32>
    %539 = vector.extract_strided_slice %524 {offsets = [0, 96], sizes = [8, 32], strides = [1, 1]} : vector<8x128xf32> to vector<8x32xf32>
    %540 = arith.negf %539 : vector<8x32xf32>
    %541 = math.exp %540 : vector<8x32xf32>
    %cst_171 = arith.constant 1.000000e+00 : f32
    %542 = vector.broadcast %cst_171 : f32 to vector<8x32xf32>
    %543 = arith.addf %542, %541 : vector<8x32xf32>
    %544 = arith.divf %542, %543 : vector<8x32xf32>
    %545 = arith.mulf %536, %492 : vector<8x32xf32>
    %546 = arith.mulf %530, %538 : vector<8x32xf32>
    %547 = arith.addf %545, %546 : vector<8x32xf32>
    %548 = math.tanh %547 : vector<8x32xf32>
    %549 = arith.mulf %544, %548 : vector<8x32xf32>
    %c12_i32_172 = arith.constant 12 : i32
    %550 = arith.muli %arg0, %c12_i32_172 : i32
    %551 = arith.addi %550, %c9_i32 : i32
    %c0_i32_173 = arith.constant 0 : i32
    %552 = arith.subi %c0_i32_173, %arg0 : i32
    %c12_i32_174 = arith.constant 12 : i32
    %553 = arith.muli %552, %c12_i32_174 : i32
    %554 = arith.addi %553, %512 : i32
    %555 = vector.extract_strided_slice %549 {offsets = [0, 0], sizes = [8, 16], strides = [1, 1]} : vector<8x32xf32> to vector<8x16xf32>
    %556 = arith.truncf %555 : vector<8x16xf32> to vector<8x16xbf16>
    %557 = arith.index_cast %551 : i32 to index
    %c0_175 = arith.constant 0 : index
    %c0_176 = arith.constant 0 : index
    %558 = vector.load %arg7[%557, %c0_175, %c0_176] : memref<12x8x32xbf16, #tpu.memory_space<vmem>>, vector<1x8x16xbf16>
    %559 = vector.shape_cast %558 : vector<1x8x16xbf16> to vector<8x16xbf16>
    %560 = vector.shape_cast %556 : vector<8x16xbf16> to vector<1x8x16xbf16>
    tpu.vector_store %arg7[%557, %c0_175, %c0_176], %560 {strides = array<i32>} : memref<12x8x32xbf16, #tpu.memory_space<vmem>>, vector<1x8x16xbf16>,
    %561 = vector.extract_strided_slice %549 {offsets = [0, 16], sizes = [8, 16], strides = [1, 1]} : vector<8x32xf32> to vector<8x16xf32>
    %562 = arith.truncf %561 : vector<8x16xf32> to vector<8x16xbf16>
    %563 = arith.index_cast %554 : i32 to index
    %c0_177 = arith.constant 0 : index
    %c16_178 = arith.constant 16 : index
    %564 = vector.load %arg7[%563, %c0_177, %c16_178] : memref<12x8x32xbf16, #tpu.memory_space<vmem>>, vector<1x8x16xbf16>
    %565 = vector.shape_cast %564 : vector<1x8x16xbf16> to vector<8x16xbf16>
    %566 = vector.shape_cast %562 : vector<8x16xbf16> to vector<1x8x16xbf16>
    tpu.vector_store %arg7[%563, %c0_177, %c16_178], %566 {strides = array<i32>} : memref<12x8x32xbf16, #tpu.memory_space<vmem>>, vector<1x8x16xbf16>,
    %c10_i32 = arith.constant 10 : i32
    %c11_i32_179 = arith.constant 11 : i32
    %567 = arith.subi %c11_i32_179, %c10_i32 : i32
    %568 = arith.truncf %549 : vector<8x32xf32> to vector<8x32xbf16>
    %cst_180 = arith.constant dense<0.000000e+00> : vector<8x128xf32>
    %569 = tpu.matmul %568, %14, %cst_180 {dimension_numbers = #tpu.dot_dimension_numbers<[1], [0], [0], [1], [0, 0, 1, 1], [], []>} : vector<8x32xbf16>, vector<32x128xbf16>, vector<8x128xf32> -> vector<8x128xf32>
    %c8_i32_181 = arith.constant 8 : i32
    %570 = arith.muli %c10_i32, %c8_i32_181 : i32
    %571 = tpu.assume_multiple %570, 8 : i32
    %c8_i32_182 = arith.constant 8 : i32
    %572 = arith.muli %567, %c8_i32_182 : i32
    %573 = tpu.assume_multiple %572, 8 : i32
    %574 = arith.index_cast %571 : i32 to index
    %c0_183 = arith.constant 0 : index
    %575 = vector.load %arg8[%574, %c0_183] : memref<96x128xf32, #tpu.memory_space<vmem>>, vector<8x128xf32>
    %576 = arith.index_cast %573 : i32 to index
    %c0_184 = arith.constant 0 : index
    %577 = vector.load %arg9[%576, %c0_184] : memref<96x128xf32, #tpu.memory_space<vmem>>, vector<8x128xf32>
    %578 = arith.addf %575, %577 : vector<8x128xf32>
    %579 = arith.addf %578, %569 : vector<8x128xf32>
    %580 = vector.extract_strided_slice %579 {offsets = [0, 0], sizes = [8, 32], strides = [1, 1]} : vector<8x128xf32> to vector<8x32xf32>
    %581 = arith.negf %580 : vector<8x32xf32>
    %582 = math.exp %581 : vector<8x32xf32>
    %cst_185 = arith.constant 1.000000e+00 : f32
    %583 = vector.broadcast %cst_185 : f32 to vector<8x32xf32>
    %584 = arith.addf %583, %582 : vector<8x32xf32>
    %585 = arith.divf %583, %584 : vector<8x32xf32>
    %586 = vector.extract_strided_slice %579 {offsets = [0, 32], sizes = [8, 32], strides = [1, 1]} : vector<8x128xf32> to vector<8x32xf32>
    %587 = arith.negf %586 : vector<8x32xf32>
    %588 = math.exp %587 : vector<8x32xf32>
    %cst_186 = arith.constant 1.000000e+00 : f32
    %589 = vector.broadcast %cst_186 : f32 to vector<8x32xf32>
    %590 = arith.addf %589, %588 : vector<8x32xf32>
    %591 = arith.divf %589, %590 : vector<8x32xf32>
    %592 = vector.extract_strided_slice %579 {offsets = [0, 64], sizes = [8, 32], strides = [1, 1]} : vector<8x128xf32> to vector<8x32xf32>
    %593 = math.tanh %592 : vector<8x32xf32>
    %594 = vector.extract_strided_slice %579 {offsets = [0, 96], sizes = [8, 32], strides = [1, 1]} : vector<8x128xf32> to vector<8x32xf32>
    %595 = arith.negf %594 : vector<8x32xf32>
    %596 = math.exp %595 : vector<8x32xf32>
    %cst_187 = arith.constant 1.000000e+00 : f32
    %597 = vector.broadcast %cst_187 : f32 to vector<8x32xf32>
    %598 = arith.addf %597, %596 : vector<8x32xf32>
    %599 = arith.divf %597, %598 : vector<8x32xf32>
    %600 = arith.mulf %591, %547 : vector<8x32xf32>
    %601 = arith.mulf %585, %593 : vector<8x32xf32>
    %602 = arith.addf %600, %601 : vector<8x32xf32>
    %603 = math.tanh %602 : vector<8x32xf32>
    %604 = arith.mulf %599, %603 : vector<8x32xf32>
    %c12_i32_188 = arith.constant 12 : i32
    %605 = arith.muli %arg0, %c12_i32_188 : i32
    %606 = arith.addi %605, %c10_i32 : i32
    %c0_i32_189 = arith.constant 0 : i32
    %607 = arith.subi %c0_i32_189, %arg0 : i32
    %c12_i32_190 = arith.constant 12 : i32
    %608 = arith.muli %607, %c12_i32_190 : i32
    %609 = arith.addi %608, %567 : i32
    %610 = vector.extract_strided_slice %604 {offsets = [0, 0], sizes = [8, 16], strides = [1, 1]} : vector<8x32xf32> to vector<8x16xf32>
    %611 = arith.truncf %610 : vector<8x16xf32> to vector<8x16xbf16>
    %612 = arith.index_cast %606 : i32 to index
    %c0_191 = arith.constant 0 : index
    %c0_192 = arith.constant 0 : index
    %613 = vector.load %arg7[%612, %c0_191, %c0_192] : memref<12x8x32xbf16, #tpu.memory_space<vmem>>, vector<1x8x16xbf16>
    %614 = vector.shape_cast %613 : vector<1x8x16xbf16> to vector<8x16xbf16>
    %615 = vector.shape_cast %611 : vector<8x16xbf16> to vector<1x8x16xbf16>
    tpu.vector_store %arg7[%612, %c0_191, %c0_192], %615 {strides = array<i32>} : memref<12x8x32xbf16, #tpu.memory_space<vmem>>, vector<1x8x16xbf16>,
    %616 = vector.extract_strided_slice %604 {offsets = [0, 16], sizes = [8, 16], strides = [1, 1]} : vector<8x32xf32> to vector<8x16xf32>
    %617 = arith.truncf %616 : vector<8x16xf32> to vector<8x16xbf16>
    %618 = arith.index_cast %609 : i32 to index
    %c0_193 = arith.constant 0 : index
    %c16_194 = arith.constant 16 : index
    %619 = vector.load %arg7[%618, %c0_193, %c16_194] : memref<12x8x32xbf16, #tpu.memory_space<vmem>>, vector<1x8x16xbf16>
    %620 = vector.shape_cast %619 : vector<1x8x16xbf16> to vector<8x16xbf16>
    %621 = vector.shape_cast %617 : vector<8x16xbf16> to vector<1x8x16xbf16>
    tpu.vector_store %arg7[%618, %c0_193, %c16_194], %621 {strides = array<i32>} : memref<12x8x32xbf16, #tpu.memory_space<vmem>>, vector<1x8x16xbf16>,
    %c11_i32_195 = arith.constant 11 : i32
    %c11_i32_196 = arith.constant 11 : i32
    %622 = arith.subi %c11_i32_196, %c11_i32_195 : i32
    %623 = arith.truncf %604 : vector<8x32xf32> to vector<8x32xbf16>
    %cst_197 = arith.constant dense<0.000000e+00> : vector<8x128xf32>
    %624 = tpu.matmul %623, %14, %cst_197 {dimension_numbers = #tpu.dot_dimension_numbers<[1], [0], [0], [1], [0, 0, 1, 1], [], []>} : vector<8x32xbf16>, vector<32x128xbf16>, vector<8x128xf32> -> vector<8x128xf32>
    %c8_i32_198 = arith.constant 8 : i32
    %625 = arith.muli %c11_i32_195, %c8_i32_198 : i32
    %626 = tpu.assume_multiple %625, 8 : i32
    %c8_i32_199 = arith.constant 8 : i32
    %627 = arith.muli %622, %c8_i32_199 : i32
    %628 = tpu.assume_multiple %627, 8 : i32
    %629 = arith.index_cast %626 : i32 to index
    %c0_200 = arith.constant 0 : index
    %630 = vector.load %arg8[%629, %c0_200] : memref<96x128xf32, #tpu.memory_space<vmem>>, vector<8x128xf32>
    %631 = arith.index_cast %628 : i32 to index
    %c0_201 = arith.constant 0 : index
    %632 = vector.load %arg9[%631, %c0_201] : memref<96x128xf32, #tpu.memory_space<vmem>>, vector<8x128xf32>
    %633 = arith.addf %630, %632 : vector<8x128xf32>
    %634 = arith.addf %633, %624 : vector<8x128xf32>
    %635 = vector.extract_strided_slice %634 {offsets = [0, 0], sizes = [8, 32], strides = [1, 1]} : vector<8x128xf32> to vector<8x32xf32>
    %636 = arith.negf %635 : vector<8x32xf32>
    %637 = math.exp %636 : vector<8x32xf32>
    %cst_202 = arith.constant 1.000000e+00 : f32
    %638 = vector.broadcast %cst_202 : f32 to vector<8x32xf32>
    %639 = arith.addf %638, %637 : vector<8x32xf32>
    %640 = arith.divf %638, %639 : vector<8x32xf32>
    %641 = vector.extract_strided_slice %634 {offsets = [0, 32], sizes = [8, 32], strides = [1, 1]} : vector<8x128xf32> to vector<8x32xf32>
    %642 = arith.negf %641 : vector<8x32xf32>
    %643 = math.exp %642 : vector<8x32xf32>
    %cst_203 = arith.constant 1.000000e+00 : f32
    %644 = vector.broadcast %cst_203 : f32 to vector<8x32xf32>
    %645 = arith.addf %644, %643 : vector<8x32xf32>
    %646 = arith.divf %644, %645 : vector<8x32xf32>
    %647 = vector.extract_strided_slice %634 {offsets = [0, 64], sizes = [8, 32], strides = [1, 1]} : vector<8x128xf32> to vector<8x32xf32>
    %648 = math.tanh %647 : vector<8x32xf32>
    %649 = vector.extract_strided_slice %634 {offsets = [0, 96], sizes = [8, 32], strides = [1, 1]} : vector<8x128xf32> to vector<8x32xf32>
    %650 = arith.negf %649 : vector<8x32xf32>
    %651 = math.exp %650 : vector<8x32xf32>
    %cst_204 = arith.constant 1.000000e+00 : f32
    %652 = vector.broadcast %cst_204 : f32 to vector<8x32xf32>
    %653 = arith.addf %652, %651 : vector<8x32xf32>
    %654 = arith.divf %652, %653 : vector<8x32xf32>
    %655 = arith.mulf %646, %602 : vector<8x32xf32>
    %656 = arith.mulf %640, %648 : vector<8x32xf32>
    %657 = arith.addf %655, %656 : vector<8x32xf32>
    %658 = math.tanh %657 : vector<8x32xf32>
    %659 = arith.mulf %654, %658 : vector<8x32xf32>
    %c12_i32_205 = arith.constant 12 : i32
    %660 = arith.muli %arg0, %c12_i32_205 : i32
    %661 = arith.addi %660, %c11_i32_195 : i32
    %c0_i32_206 = arith.constant 0 : i32
    %662 = arith.subi %c0_i32_206, %arg0 : i32
    %c12_i32_207 = arith.constant 12 : i32
    %663 = arith.muli %662, %c12_i32_207 : i32
    %664 = arith.addi %663, %622 : i32
    %665 = vector.extract_strided_slice %659 {offsets = [0, 0], sizes = [8, 16], strides = [1, 1]} : vector<8x32xf32> to vector<8x16xf32>
    %666 = arith.truncf %665 : vector<8x16xf32> to vector<8x16xbf16>
    %667 = arith.index_cast %661 : i32 to index
    %c0_208 = arith.constant 0 : index
    %c0_209 = arith.constant 0 : index
    %668 = vector.load %arg7[%667, %c0_208, %c0_209] : memref<12x8x32xbf16, #tpu.memory_space<vmem>>, vector<1x8x16xbf16>
    %669 = vector.shape_cast %668 : vector<1x8x16xbf16> to vector<8x16xbf16>
    %670 = vector.shape_cast %666 : vector<8x16xbf16> to vector<1x8x16xbf16>
    tpu.vector_store %arg7[%667, %c0_208, %c0_209], %670 {strides = array<i32>} : memref<12x8x32xbf16, #tpu.memory_space<vmem>>, vector<1x8x16xbf16>,
    %671 = vector.extract_strided_slice %659 {offsets = [0, 16], sizes = [8, 16], strides = [1, 1]} : vector<8x32xf32> to vector<8x16xf32>
    %672 = arith.truncf %671 : vector<8x16xf32> to vector<8x16xbf16>
    %673 = arith.index_cast %664 : i32 to index
    %c0_210 = arith.constant 0 : index
    %c16_211 = arith.constant 16 : index
    %674 = vector.load %arg7[%673, %c0_210, %c16_211] : memref<12x8x32xbf16, #tpu.memory_space<vmem>>, vector<1x8x16xbf16>
    %675 = vector.shape_cast %674 : vector<1x8x16xbf16> to vector<8x16xbf16>
    %676 = vector.shape_cast %672 : vector<8x16xbf16> to vector<1x8x16xbf16>
    tpu.vector_store %arg7[%673, %c0_210, %c16_211], %676 {strides = array<i32>} : memref<12x8x32xbf16, #tpu.memory_space<vmem>>, vector<1x8x16xbf16>,
    %c12_i32_212 = arith.constant 12 : i32
    %c0_213 = arith.constant 0 : index
    %c0_214 = arith.constant 0 : index
    %677 = vector.load %arg10[%c0_213, %c0_214] : memref<8x32xf32, #tpu.memory_space<vmem>>, vector<8x32xf32>
    tpu.vector_store %arg10[%c0_213, %c0_214], %659 {strides = array<i32>} : memref<8x32xf32, #tpu.memory_space<vmem>>, vector<8x32xf32>,
    %c0_215 = arith.constant 0 : index
    %c0_216 = arith.constant 0 : index
    %678 = vector.load %arg11[%c0_215, %c0_216] : memref<8x32xf32, #tpu.memory_space<vmem>>, vector<8x32xf32>
    tpu.vector_store %arg11[%c0_215, %c0_216], %657 {strides = array<i32>} : memref<8x32xf32, #tpu.memory_space<vmem>>, vector<8x32xf32>,
    return
  }
  func.func @transform_0(%arg0: i32) -> (i32, i32) {
    %c0_i32 = arith.constant 0 : i32
    %c0_i32_0 = arith.constant 0 : i32
    return %arg0, %c0_i32 : i32, i32
  }
  func.func @transform_1(%arg0: i32) -> (i32, i32) {
    %c0_i32 = arith.constant 0 : i32
    %0 = arith.subi %c0_i32, %arg0 : i32
    %c0_i32_0 = arith.constant 0 : i32
    %c0_i32_1 = arith.constant 0 : i32
    return %0, %c0_i32_0 : i32, i32
  }
  func.func @transform_2(%arg0: i32) -> (i32, i32) {
    %c0_i32 = arith.constant 0 : i32
    %c0_i32_0 = arith.constant 0 : i32
    %c0_i32_1 = arith.constant 0 : i32
    return %c0_i32, %c0_i32_0 : i32, i32
  }
  func.func @transform_3(%arg0: i32) -> (i32, i32) {
    %c0_i32 = arith.constant 0 : i32
    %c0_i32_0 = arith.constant 0 : i32
    %c0_i32_1 = arith.constant 0 : i32
    return %c0_i32, %c0_i32_0 : i32, i32
  }
  func.func @transform_4(%arg0: i32) -> (i32, i32) {
    %c0_i32 = arith.constant 0 : i32
    %c0_i32_0 = arith.constant 0 : i32
    %c0_i32_1 = arith.constant 0 : i32
    return %c0_i32, %c0_i32_0 : i32, i32
  }
  func.func @transform_5(%arg0: i32) -> (i32, i32) {
    %c0_i32 = arith.constant 0 : i32
    %c0_i32_0 = arith.constant 0 : i32
    %c0_i32_1 = arith.constant 0 : i32
    return %c0_i32, %c0_i32_0 : i32, i32
  }
  func.func @transform_6(%arg0: i32) -> (i32, i32, i32) {
    %c0_i32 = arith.constant 0 : i32
    %c0_i32_0 = arith.constant 0 : i32
    %c0_i32_1 = arith.constant 0 : i32
    %c0_i32_2 = arith.constant 0 : i32
    return %c0_i32, %c0_i32_0, %c0_i32_1 : i32, i32, i32
  }
}

</mosaic_0001>

<llo_original>
// kernel: _bilstm_apply.3
$region0: #{_bilstm_apply.3}
  #allocation0 [shape = 'u32[]', space=smem, size = 0x4, offset = 0x4, fixed_abs, tag = 'smem constant byte address 0x4 - core index']
  #allocation1 [shape = 'u32[144,128]{1,0:T(1,128)}', space=vmem, size = 0x12000, scoped, tag = 'internal scratch']
  #allocation2 [shape = 'f32[96,128]{1,0:T(8,128)}', space=vmem, size = 0xc000, scoped, tag = 'scratch operand']
  #allocation3 [shape = 'f32[96,128]{1,0:T(8,128)}', space=vmem, size = 0xc000, scoped, tag = 'scratch operand']
  #allocation4 [shape = 'f32[8,32]{1,0:T(8,128)}', space=vmem, size = 0x1000, scoped, tag = 'scratch operand']
  #allocation5 [shape = 'f32[8,32]{1,0:T(8,128)}', space=vmem, size = 0x1000, scoped, tag = 'scratch operand']
  %s0 = inlined_call_operand.vmem [shape: bf16[96,32], index: 0, kind: input, shape index: {}, may-alias: {0,1}]
  %s1 = inlined_call_operand.vmem [shape: bf16[96,32], index: 1, kind: input, shape index: {}, may-alias: {0,1}]
  %s2 = inlined_call_operand.vmem [shape: bf16[32,128], index: 2, kind: input, shape index: {}]
  %s3 = inlined_call_operand.vmem [shape: bf16[32,128], index: 3, kind: input, shape index: {}]
  %s4 = inlined_call_operand.vmem [shape: bf16[32,128], index: 4, kind: input, shape index: {}]
  %s5 = inlined_call_operand.vmem [shape: f32[1,128], index: 5, kind: input, shape index: {}]
  %s6 = inlined_call_operand.vmem [shape: bf16[12,8,32], index: 6, kind: output, shape index: {}]
  %s7 = sld [smem:[#allocation0]]
  $region38: #{_bilstm_apply.3} parent=0
    _
  %s9 = ssub.s32 1, %s7
  %s10 = scalar_select 0, %s9, %s7
  // Predicated region
  $region2: #{_bilstm_apply.3} parent=0 // pred_check
    _
  $region3: #{_bilstm_apply.3} parent=0 // pred_check_branch
    %12 = sbr.rel (0) target = $region5
  $region4: #{_bilstm_apply.3} parent=0 // pred_region
    _
  $region5: #{_bilstm_apply.3} parent=0 // pred_fallthru
    _
  // Predicated region
  $region6: #{_bilstm_apply.3} parent=0 // pred_check
    _
  $region7: #{_bilstm_apply.3} parent=0 // pred_check_branch
    %14 = sbr.rel (0) target = $region9
  $region8: #{_bilstm_apply.3} parent=0 // pred_region
    %s15 = ssub.s32 0, 0
    %s16 = smul.u32 12, %s15
    %p17 = scmp.lt.s32.totalorder %s16, 11
    %s18 = scalar_select %p17, %s16, 11
    %s19 = smul.addr %s18, 4
    %s20 = scalar_lea.vmem %s1, %s19
    %s21 = ssub.s32 0, 0
    %s22 = smul.u32 12, %s21
  $region9: #{_bilstm_apply.3} parent=0 // pred_fallthru
    _
  // Predicated region
  $region10: #{_bilstm_apply.3} parent=0 // pred_check
    _
  $region11: #{_bilstm_apply.3} parent=0 // pred_check_branch
    %24 = sbr.rel (0) target = $region13
  $region12: #{_bilstm_apply.3} parent=0 // pred_region
    _
  $region13: #{_bilstm_apply.3} parent=0 // pred_fallthru
    _
  // Predicated region
  $region14: #{_bilstm_apply.3} parent=0 // pred_check
    _
  $region15: #{_bilstm_apply.3} parent=0 // pred_check_branch
    %26 = sbr.rel (0) target = $region17
  $region16: #{_bilstm_apply.3} parent=0 // pred_region
    _
  $region17: #{_bilstm_apply.3} parent=0 // pred_fallthru
    _
  // Predicated region
  $region18: #{_bilstm_apply.3} parent=0 // pred_check
    _
  $region19: #{_bilstm_apply.3} parent=0 // pred_check_branch
    %28 = sbr.rel (0) target = $region21
  $region20: #{_bilstm_apply.3} parent=0 // pred_region
    _
  $region21: #{_bilstm_apply.3} parent=0 // pred_fallthru
    _
  // Predicated region
  $region22: #{_bilstm_apply.3} parent=0 // pred_check
    _
  $region23: #{_bilstm_apply.3} parent=0 // pred_check_branch
    %30 = sbr.rel (0) target = $region25
  $region24: #{_bilstm_apply.3} parent=0 // pred_region
    _
  $region25: #{_bilstm_apply.3} parent=0 // pred_fallthru
    _
  %s31 = ssub.s32 0, 0
  %s32 = smul.u32 12, %s31
  %p33 = scmp.lt.s32.totalorder %s32, 11
  %s34 = scalar_select %p33, %s32, 11
  %s35 = smul.addr %s34, 4
  %s36 = scalar_lea.vmem %s1, %s35
  %s37 = ssub.s32 0, 0
  %s38 = smul.u32 12, %s37
  %p39 = scmp.lt.s32.totalorder %s38, 11
  %s40 = scalar_select %p39, %s38, 11
  %s41 = smul.addr %s40, 4
  %s42 = scalar_lea.vmem %s1, %s41
  %s43 = ssub.s32 0, 0
  %s44 = smul.u32 12, %s43
  %p46 = scmp.eq.s32.totalorder 0, 0
  // Predicated region
  $region26: #{_bilstm_apply.3} parent=0 // pred_check
    %p47 = pneg %p46
  $region27: #{_bilstm_apply.3} parent=0 // pred_check_branch
    %49 = sbr.rel (%p47) target = $region29
  $region28: #{_bilstm_apply.3} parent=0 // pred_region
    %vm50 = vcmask 261120
    %51 = vst.msk [vmem:[#allocation4] sm:$0xff] %vm50, 0.0
    %52 = vst.msk [vmem:[#allocation5] sm:$0xff] %vm50, 0.0
  $region29: #{_bilstm_apply.3} parent=0 // pred_fallthru
    _
  %v53 = vld [vmem:[%s5] sm:$0x1]
  %v54 = vld [vmem:[%s0] sm:$0xf]
  %v55 = vld [vmem:[%s0 + $0x4] sm:$0xf]
  %v56 = vld [vmem:[%s0 + $0x8] sm:$0xf]
  %v57 = vld [vmem:[%s0 + $0xc] sm:$0xf]
  %v58 = vld [vmem:[%s0 + $0x10] sm:$0xf]
  %v59 = vld [vmem:[%s0 + $0x14] sm:$0xf]
  %v60 = vld [vmem:[%s0 + $0x18] sm:$0xf]
  %v61 = vld [vmem:[%s0 + $0x1c] sm:$0xf]
  %v62 = vld [vmem:[%s0 + $0x20] sm:$0xf]
  %v63 = vld [vmem:[%s0 + $0x24] sm:$0xf]
  %v64 = vld [vmem:[%s0 + $0x28] sm:$0xf]
  %v65 = vld [vmem:[%s0 + $0x2c] sm:$0xf]
  %v66 = vld [vmem:[%s2] sm:$0xf]
  %v67 = vld [vmem:[%s2 + $0x4] sm:$0xf]
  %v68 = vld [vmem:[%s2 + $0x8] sm:$0xf]
  %v69 = vld [vmem:[%s2 + $0xc] sm:$0xf]
  %v71 = vlaneseq
  %v72 = vshrl.u32 %v71, 7
  %v73 = vsub.s32 0, %v72
  %v74 = vrot.slane %v53, %v73
  %v88 = vunpack.c.l.b16 %v54
  %v89 = vunpack.c.l.b16 %v55
  %v90 = vunpack.c.l.b16 %v56
  %v91 = vunpack.c.l.b16 %v57
  %v92 = vunpack.c.l.b16 %v58
  %v93 = vunpack.c.l.b16 %v59
  %v94 = vunpack.c.l.b16 %v60
  %v95 = vunpack.c.l.b16 %v61
  %v96 = vunpack.c.l.b16 %v62
  %v97 = vunpack.c.l.b16 %v63
  %v98 = vunpack.c.l.b16 %v64
  %v99 = vunpack.c.l.b16 %v65
  %v100 = vpack.c.b16 %v89, %v88
  %v101 = vpack.c.b16 %v91, %v90
  %v102 = vpack.c.b16 %v93, %v92
  %v103 = vpack.c.b16 %v95, %v94
  %v104 = vpack.c.b16 %v97, %v96
  %v105 = vpack.c.b16 %v99, %v98
  %v110 = vunpack.c.l.b16 %v66
  %v111 = vunpack.c.l.b16 %v67
  %v112 = vunpack.c.l.b16 %v68
  %v113 = vunpack.c.l.b16 %v69
  %v114 = vpack.c.b16 %v111, %v110
  %v115 = vpack.c.b16 %v113, %v112
  %vm118 = vcmask 261120
  %v120 = vsel %vm118, %v100, 0
  %v123 = vsel %vm118, %v101, 0
  %v126 = vsel %vm118, %v102, 0
  %v129 = vsel %vm118, %v103, 0
  %v132 = vsel %vm118, %v104, 0
  %v135 = vsel %vm118, %v105, 0
  %137 = vmatprep.subr.bf16.mxu0 0
  %138 = vmatpush1.bf16.msra.mxu0 %v114
  %139 = vmatprep.subr.bf16.mxu0 0
  %140 = vmatpush1.bf16.msra.mxu0 %v115
  %141 = vmatprep.subr.bf16.mxu0 0
  %142 = vmatpush1.bf16.msra.mxu0 0
  %143 = vmatprep.subr.bf16.mxu0 0
  %144 = vmatpush1.bf16.msra.mxu0 0
  %145 = vmatprep.subr.bf16.mxu0 0
  %146 = vmatpush1.bf16.msra.mxu0 0
  %147 = vmatprep.subr.bf16.mxu0 0
  %148 = vmatpush1.bf16.msra.mxu0 0
  %149 = vmatprep.subr.bf16.mxu0 0
  %150 = vmatpush1.bf16.msra.mxu0 0
  %151 = vmatprep.subr.bf16.mxu0 0
  %152 = vmatpush1.bf16.msra.mxu0 0
  %153 = vmatprep.subr.bf16.mxu0 0
  %154 = vmatpush1.bf16.msra.mxu0 0
  %155 = vmatprep.subr.bf16.mxu0 0
  %156 = vmatpush1.bf16.msra.mxu0 0
  %157 = vmatprep.subr.bf16.mxu0 0
  %158 = vmatpush1.bf16.msra.mxu0 0
  %159 = vmatprep.subr.bf16.mxu0 0
  %160 = vmatpush1.bf16.msra.mxu0 0
  %161 = vmatprep.subr.bf16.mxu0 0
  %162 = vmatpush1.bf16.msra.mxu0 0
  %163 = vmatprep.subr.bf16.mxu0 0
  %164 = vmatpush1.bf16.msra.mxu0 0
  %165 = vmatprep.subr.bf16.mxu0 0
  %166 = vmatpush1.bf16.msra.mxu0 0
  %167 = vmatprep.subr.bf16.mxu0 0
  %168 = vmatpush1.bf16.msra.mxu0 0
  %169 = vmatprep.mubr.bf16.mxu0 0
  %170 = vmatmul.mubr.bf16.gmra.mrb[0].mxu0 %v120
  %v171 = vpop.f32.mrb[0].mxu0
  %v172 = vadd.f32 %v74, %v171
  %v173 = vpop.f32.mrb[0].mxu0
  %v174 = vpop.f32.mrb[0].mxu0
  %v175 = vadd.f32 %v74, %v174
  %v176 = vpop.f32.mrb[0].mxu0
  %177 = vmatprep.mubr.bf16.mxu0 0
  %178 = vmatmul.mubr.bf16.gmra.mrb[0].mxu0 %v123
  %v179 = vpop.f32.mrb[0].mxu0
  %v180 = vadd.f32 %v74, %v179
  %v181 = vpop.f32.mrb[0].mxu0
  %v182 = vpop.f32.mrb[0].mxu0
  %v183 = vadd.f32 %v74, %v182
  %v184 = vpop.f32.mrb[0].mxu0
  %185 = vmatprep.mubr.bf16.mxu0 0
  %186 = vmatmul.mubr.bf16.gmra.mrb[0].mxu0 %v126
  %v187 = vpop.f32.mrb[0].mxu0
  %v188 = vadd.f32 %v74, %v187
  %v189 = vpop.f32.mrb[0].mxu0
  %v190 = vpop.f32.mrb[0].mxu0
  %v191 = vadd.f32 %v74, %v190
  %v192 = vpop.f32.mrb[0].mxu0
  %193 = vmatprep.mubr.bf16.mxu0 0
  %194 = vmatmul.mubr.bf16.gmra.mrb[0].mxu0 %v129
  %v195 = vpop.f32.mrb[0].mxu0
  %v196 = vadd.f32 %v74, %v195
  %v197 = vpop.f32.mrb[0].mxu0
  %v198 = vpop.f32.mrb[0].mxu0
  %v199 = vadd.f32 %v74, %v198
  %v200 = vpop.f32.mrb[0].mxu0
  %201 = vmatprep.mubr.bf16.mxu0 0
  %202 = vmatmul.mubr.bf16.gmra.mrb[0].mxu0 %v132
  %v203 = vpop.f32.mrb[0].mxu0
  %v204 = vadd.f32 %v74, %v203
  %v205 = vpop.f32.mrb[0].mxu0
  %v206 = vpop.f32.mrb[0].mxu0
  %v207 = vadd.f32 %v74, %v206
  %v208 = vpop.f32.mrb[0].mxu0
  %209 = vmatprep.mubr.bf16.mxu0 0
  %210 = vmatmul.mubr.bf16.gmra.mrb[0].mxu0 %v135
  %v211 = vpop.f32.mrb[0].mxu0
  %v212 = vadd.f32 %v74, %v211
  %v213 = vpop.f32.mrb[0].mxu0
  %v214 = vpop.f32.mrb[0].mxu0
  %v215 = vadd.f32 %v74, %v214
  %v216 = vpop.f32.mrb[0].mxu0
  %217 = vdwg.mxu0
  %218 = vst [vmem:[#allocation2] sm:$0xff] %v172
  %219 = vst [vmem:[#allocation2 + $0x8] sm:$0xff] %v175
  %220 = vst [vmem:[#allocation2 + $0x10] sm:$0xff] %v180
  %221 = vst [vmem:[#allocation2 + $0x18] sm:$0xff] %v183
  %222 = vst [vmem:[#allocation2 + $0x20] sm:$0xff] %v188
  %223 = vst [vmem:[#allocation2 + $0x28] sm:$0xff] %v191
  %224 = vst [vmem:[#allocation2 + $0x30] sm:$0xff] %v196
  %225 = vst [vmem:[#allocation2 + $0x38] sm:$0xff] %v199
  %226 = vst [vmem:[#allocation2 + $0x40] sm:$0xff] %v204
  %227 = vst [vmem:[#allocation2 + $0x48] sm:$0xff] %v207
  %228 = vst [vmem:[#allocation2 + $0x50] sm:$0xff] %v212
  %229 = vst [vmem:[#allocation2 + $0x58] sm:$0xff] %v215
  %v230 = vld [vmem:[%s42] sm:$0xf]
  %v231 = vld [vmem:[%s42 + $0x4] sm:$0xf]
  %v232 = vld [vmem:[%s42 + $0x8] sm:$0xf]
  %v233 = vld [vmem:[%s42 + $0xc] sm:$0xf]
  %v234 = vld [vmem:[%s42 + $0x10] sm:$0xf]
  %v235 = vld [vmem:[%s42 + $0x14] sm:$0xf]
  %v236 = vld [vmem:[%s42 + $0x18] sm:$0xf]
  %v237 = vld [vmem:[%s42 + $0x1c] sm:$0xf]
  %v238 = vld [vmem:[%s42 + $0x20] sm:$0xf]
  %v239 = vld [vmem:[%s42 + $0x24] sm:$0xf]
  %v240 = vld [vmem:[%s42 + $0x28] sm:$0xf]
  %v241 = vld [vmem:[%s42 + $0x2c] sm:$0xf]
  %v242 = vld [vmem:[%s3] sm:$0xf]
  %v243 = vld [vmem:[%s3 + $0x4] sm:$0xf]
  %v244 = vld [vmem:[%s3 + $0x8] sm:$0xf]
  %v245 = vld [vmem:[%s3 + $0xc] sm:$0xf]
  %v258 = vunpack.c.l.b16 %v230
  %v259 = vunpack.c.l.b16 %v231
  %v260 = vunpack.c.l.b16 %v232
  %v261 = vunpack.c.l.b16 %v233
  %v262 = vunpack.c.l.b16 %v234
  %v263 = vunpack.c.l.b16 %v235
  %v264 = vunpack.c.l.b16 %v236
  %v265 = vunpack.c.l.b16 %v237
  %v266 = vunpack.c.l.b16 %v238
  %v267 = vunpack.c.l.b16 %v239
  %v268 = vunpack.c.l.b16 %v240
  %v269 = vunpack.c.l.b16 %v241
  %v270 = vpack.c.b16 %v259, %v258
  %v271 = vpack.c.b16 %v261, %v260
  %v272 = vpack.c.b16 %v263, %v262
  %v273 = vpack.c.b16 %v265, %v264
  %v274 = vpack.c.b16 %v267, %v266
  %v275 = vpack.c.b16 %v269, %v268
  %v280 = vunpack.c.l.b16 %v242
  %v281 = vunpack.c.l.b16 %v243
  %v282 = vunpack.c.l.b16 %v244
  %v283 = vunpack.c.l.b16 %v245
  %v284 = vpack.c.b16 %v281, %v280
  %v285 = vpack.c.b16 %v283, %v282
  %v289 = vsel %vm118, %v270, 0
  %v292 = vsel %vm118, %v271, 0
  %v295 = vsel %vm118, %v272, 0
  %v298 = vsel %vm118, %v273, 0
  %v301 = vsel %vm118, %v274, 0
  %v304 = vsel %vm118, %v275, 0
  %306 = vmatprep.subr.bf16.mxu0 0
  %307 = vmatpush1.bf16.msra.mxu0 %v284
  %308 = vmatprep.subr.bf16.mxu0 0
  %309 = vmatpush1.bf16.msra.mxu0 %v285
  %310 = vmatprep.subr.bf16.mxu0 0
  %311 = vmatpush1.bf16.msra.mxu0 0
  %312 = vmatprep.subr.bf16.mxu0 0
  %313 = vmatpush1.bf16.msra.mxu0 0
  %314 = vmatprep.subr.bf16.mxu0 0
  %315 = vmatpush1.bf16.msra.mxu0 0
  %316 = vmatprep.subr.bf16.mxu0 0
  %317 = vmatpush1.bf16.msra.mxu0 0
  %318 = vmatprep.subr.bf16.mxu0 0
  %319 = vmatpush1.bf16.msra.mxu0 0
  %320 = vmatprep.subr.bf16.mxu0 0
  %321 = vmatpush1.bf16.msra.mxu0 0
  %322 = vmatprep.subr.bf16.mxu0 0
  %323 = vmatpush1.bf16.msra.mxu0 0
  %324 = vmatprep.subr.bf16.mxu0 0
  %325 = vmatpush1.bf16.msra.mxu0 0
  %326 = vmatprep.subr.bf16.mxu0 0
  %327 = vmatpush1.bf16.msra.mxu0 0
  %328 = vmatprep.subr.bf16.mxu0 0
  %329 = vmatpush1.bf16.msra.mxu0 0
  %330 = vmatprep.subr.bf16.mxu0 0
  %331 = vmatpush1.bf16.msra.mxu0 0
  %332 = vmatprep.subr.bf16.mxu0 0
  %333 = vmatpush1.bf16.msra.mxu0 0
  %334 = vmatprep.subr.bf16.mxu0 0
  %335 = vmatpush1.bf16.msra.mxu0 0
  %336 = vmatprep.subr.bf16.mxu0 0
  %337 = vmatpush1.bf16.msra.mxu0 0
  %338 = vmatprep.mubr.bf16.mxu0 0
  %339 = vmatmul.mubr.bf16.gmra.mrb[0].mxu0 %v289
  %v340 = vpop.f32.mrb[0].mxu0
  %v341 = vadd.f32 0.0, %v340
  %v342 = vpop.f32.mrb[0].mxu0
  %v343 = vpop.f32.mrb[0].mxu0
  %v344 = vadd.f32 0.0, %v343
  %v345 = vpop.f32.mrb[0].mxu0
  %346 = vmatprep.mubr.bf16.mxu0 0
  %347 = vmatmul.mubr.bf16.gmra.mrb[0].mxu0 %v292
  %v348 = vpop.f32.mrb[0].mxu0
  %v349 = vadd.f32 0.0, %v348
  %v350 = vpop.f32.mrb[0].mxu0
  %v351 = vpop.f32.mrb[0].mxu0
  %v352 = vadd.f32 0.0, %v351
  %v353 = vpop.f32.mrb[0].mxu0
  %354 = vmatprep.mubr.bf16.mxu0 0
  %355 = vmatmul.mubr.bf16.gmra.mrb[0].mxu0 %v295
  %v356 = vpop.f32.mrb[0].mxu0
  %v357 = vadd.f32 0.0, %v356
  %v358 = vpop.f32.mrb[0].mxu0
  %v359 = vpop.f32.mrb[0].mxu0
  %v360 = vadd.f32 0.0, %v359
  %v361 = vpop.f32.mrb[0].mxu0
  %362 = vmatprep.mubr.bf16.mxu0 0
  %363 = vmatmul.mubr.bf16.gmra.mrb[0].mxu0 %v298
  %v364 = vpop.f32.mrb[0].mxu0
  %v365 = vadd.f32 0.0, %v364
  %v366 = vpop.f32.mrb[0].mxu0
  %v367 = vpop.f32.mrb[0].mxu0
  %v368 = vadd.f32 0.0, %v367
  %v369 = vpop.f32.mrb[0].mxu0
  %370 = vmatprep.mubr.bf16.mxu0 0
  %371 = vmatmul.mubr.bf16.gmra.mrb[0].mxu0 %v301
  %v372 = vpop.f32.mrb[0].mxu0
  %v373 = vadd.f32 0.0, %v372
  %v374 = vpop.f32.mrb[0].mxu0
  %v375 = vpop.f32.mrb[0].mxu0
  %v376 = vadd.f32 0.0, %v375
  %v377 = vpop.f32.mrb[0].mxu0
  %378 = vmatprep.mubr.bf16.mxu0 0
  %379 = vmatmul.mubr.bf16.gmra.mrb[0].mxu0 %v304
  %v380 = vpop.f32.mrb[0].mxu0
  %v381 = vadd.f32 0.0, %v380
  %v382 = vpop.f32.mrb[0].mxu0
  %v383 = vpop.f32.mrb[0].mxu0
  %v384 = vadd.f32 0.0, %v383
  %v385 = vpop.f32.mrb[0].mxu0
  %386 = vdwg.mxu0
  %387 = vst [vmem:[#allocation3] sm:$0xff] %v341
  %388 = vst [vmem:[#allocation3 + $0x8] sm:$0xff] %v344
  %389 = vst [vmem:[#allocation3 + $0x10] sm:$0xff] %v349
  %390 = vst [vmem:[#allocation3 + $0x18] sm:$0xff] %v352
  %391 = vst [vmem:[#allocation3 + $0x20] sm:$0xff] %v357
  %392 = vst [vmem:[#allocation3 + $0x28] sm:$0xff] %v360
  %393 = vst [vmem:[#allocation3 + $0x30] sm:$0xff] %v365
  %394 = vst [vmem:[#allocation3 + $0x38] sm:$0xff] %v368
  %395 = vst [vmem:[#allocation3 + $0x40] sm:$0xff] %v373
  %396 = vst [vmem:[#allocation3 + $0x48] sm:$0xff] %v376
  %397 = vst [vmem:[#allocation3 + $0x50] sm:$0xff] %v381
  %398 = vst [vmem:[#allocation3 + $0x58] sm:$0xff] %v384
  %v399 = vld [vmem:[%s4] sm:$0xf]
  %v400 = vld [vmem:[%s4 + $0x4] sm:$0xf]
  %v401 = vld [vmem:[%s4 + $0x8] sm:$0xf]
  %v402 = vld [vmem:[%s4 + $0xc] sm:$0xf]
  %v403 = vld [vmem:[#allocation4] sm:$0xff]
  %v404 = vld [vmem:[#allocation5] sm:$0xff]
  %v405 = vpack.c.bf16 %v403, %v403
  %v410 = vunpack.c.l.b16 %v399
  %v411 = vunpack.c.l.b16 %v400
  %v412 = vunpack.c.l.b16 %v401
  %v413 = vunpack.c.l.b16 %v402
  %v414 = vpack.c.b16 %v411, %v410
  %v415 = vpack.c.b16 %v413, %v412
  %v419 = vsel %vm118, %v405, 0
  %421 = vmatprep.subr.bf16.mxu0 0
  %422 = vmatpush1.bf16.msra.mxu0 %v414
  %423 = vmatprep.subr.bf16.mxu0 0
  %424 = vmatpush1.bf16.msra.mxu0 %v415
  %425 = vmatprep.subr.bf16.mxu0 0
  %426 = vmatpush1.bf16.msra.mxu0 0
  %427 = vmatprep.subr.bf16.mxu0 0
  %428 = vmatpush1.bf16.msra.mxu0 0
  %429 = vmatprep.subr.bf16.mxu0 0
  %430 = vmatpush1.bf16.msra.mxu0 0
  %431 = vmatprep.subr.bf16.mxu0 0
  %432 = vmatpush1.bf16.msra.mxu0 0
  %433 = vmatprep.subr.bf16.mxu0 0
  %434 = vmatpush1.bf16.msra.mxu0 0
  %435 = vmatprep.subr.bf16.mxu0 0
  %436 = vmatpush1.bf16.msra.mxu0 0
  %437 = vmatprep.subr.bf16.mxu0 0
  %438 = vmatpush1.bf16.msra.mxu0 0
  %439 = vmatprep.subr.bf16.mxu0 0
  %440 = vmatpush1.bf16.msra.mxu0 0
  %441 = vmatprep.subr.bf16.mxu0 0
  %442 = vmatpush1.bf16.msra.mxu0 0
  %443 = vmatprep.subr.bf16.mxu0 0
  %444 = vmatpush1.bf16.msra.mxu0 0
  %445 = vmatprep.subr.bf16.mxu0 0
  %446 = vmatpush1.bf16.msra.mxu0 0
  %447 = vmatprep.subr.bf16.mxu0 0
  %448 = vmatpush1.bf16.msra.mxu0 0
  %449 = vmatprep.subr.bf16.mxu0 0
  %450 = vmatpush1.bf16.msra.mxu0 0
  %451 = vmatprep.subr.bf16.mxu0 0
  %452 = vmatpush1.bf16.msra.mxu0 0
  %453 = vmatprep.mubr.bf16.mxu0 0
  %454 = vmatmul.mubr.bf16.gmra.mrb[0].mxu0 %v419
  %v455 = vpop.f32.mrb[0].mxu0
  %v456 = vadd.f32 0.0, %v455
  %v457 = vpop.f32.mrb[0].mxu0
  %v458 = vpop.f32.mrb[0].mxu0
  %v459 = vpop.f32.mrb[0].mxu0
  %460 = vdwg.mxu0
  %v461 = vld [vmem:[#allocation2] sm:$0xff]
  %s462 = scalar_lea.vmem [#allocation3], 88
  %v463 = vld [vmem:[%s462] sm:$0xff]
  %v464 = vadd.f32 %v461, %v463
  %v465 = vadd.f32 %v464, %v456
  %v466 = vxor.u32 %v465, 2147483648
  %v467 = vmul.f32 %v466, 1.442695
  %v468 = vpow.pop %v467
  %v469 = vadd.f32 %v468, 1.0
  %v470 = vrcp.pop %v469
  %v471 = vmul.f32 1.0, %v470
  %v472 = vtanh.pop %v465
  %474 = vrot.lane.b32.xlu0 %v404, 32
  %v475 = vpop.permute.xlu0 %474
  %v477 = vmul.f32 %v471, %v475
  %479 = vrot.lane.b32.xlu0 %v472, 64
  %v480 = vpop.permute.xlu0 %479
  %v482 = vmul.f32 %v471, %v480
  %484 = vrot.lane.b32.xlu0 %v482, 32
  %v485 = vpop.permute.xlu0 %484
  %v487 = vadd.f32 %v477, %v485
  %v488 = vtanh.pop %v487
  %490 = vrot.lane.b32.xlu0 %v488, 64
  %v491 = vpop.permute.xlu0 %490
  %v493 = vmul.f32 %v471, %v491
  %s494 = smul.u32 0, 12
  %s495 = ssub.s32 0, 0
  %s496 = smul.u32 %s495, 12
  %s497 = sadd.s32 %s496, 11
  %v498 = vpack.c.bf16 %v493, %v493
  %v500 = vunpack.c.l.b16 %v498
  %v501 = vpack.c.b16 %v500, %v500
  %502 = vrot.lane.b32.xlu0 %v501, 32
  %v503 = vpop.permute.xlu0 %502
  %s505 = smul.addr %s494, 4
  %s506 = scalar_lea.vmem %s6, %s505
  %vm507 = vcmask 125952
  %508 = vst.msk [vmem:[%s506] sm:$0xf] %vm507, %v503
  %s509 = smul.addr %s497, 4
  %s510 = scalar_lea.vmem %s6, %s509
  %vm511 = vcmask 257152
  %512 = vst.msk [vmem:[%s510] sm:$0xf] %vm511, %v503
  %513 = vrot.lane.b32.xlu0 %v498, 32
  %v514 = vpop.permute.xlu0 %513
  %v516 = vsel %vm118, %v514, 0
  %518 = vmatprep.subr.bf16.mxu0 0
  %519 = vmatpush1.bf16.msra.mxu0 %v414
  %520 = vmatprep.subr.bf16.mxu0 0
  %521 = vmatpush1.bf16.msra.mxu0 %v415
  %522 = vmatprep.subr.bf16.mxu0 0
  %523 = vmatpush1.bf16.msra.mxu0 0
  %524 = vmatprep.subr.bf16.mxu0 0
  %525 = vmatpush1.bf16.msra.mxu0 0
  %526 = vmatprep.subr.bf16.mxu0 0
  %527 = vmatpush1.bf16.msra.mxu0 0
  %528 = vmatprep.subr.bf16.mxu0 0
  %529 = vmatpush1.bf16.msra.mxu0 0
  %530 = vmatprep.subr.bf16.mxu0 0
  %531 = vmatpush1.bf16.msra.mxu0 0
  %532 = vmatprep.subr.bf16.mxu0 0
  %533 = vmatpush1.bf16.msra.mxu0 0
  %534 = vmatprep.subr.bf16.mxu0 0
  %535 = vmatpush1.bf16.msra.mxu0 0
  %536 = vmatprep.subr.bf16.mxu0 0
  %537 = vmatpush1.bf16.msra.mxu0 0
  %538 = vmatprep.subr.bf16.mxu0 0
  %539 = vmatpush1.bf16.msra.mxu0 0
  %540 = vmatprep.subr.bf16.mxu0 0
  %541 = vmatpush1.bf16.msra.mxu0 0
  %542 = vmatprep.subr.bf16.mxu0 0
  %543 = vmatpush1.bf16.msra.mxu0 0
  %544 = vmatprep.subr.bf16.mxu0 0
  %545 = vmatpush1.bf16.msra.mxu0 0
  %546 = vmatprep.subr.bf16.mxu0 0
  %547 = vmatpush1.bf16.msra.mxu0 0
  %548 = vmatprep.subr.bf16.mxu0 0
  %549 = vmatpush1.bf16.msra.mxu0 0
  %550 = vmatprep.mubr.bf16.mxu0 0
  %551 = vmatmul.mubr.bf16.gmra.mrb[0].mxu0 %v516
  %v552 = vpop.f32.mrb[0].mxu0
  %v553 = vadd.f32 0.0, %v552
  %v554 = vpop.f32.mrb[0].mxu0
  %v555 = vpop.f32.mrb[0].mxu0
  %v556 = vpop.f32.mrb[0].mxu0
  %557 = vdwg.mxu0
  %s558 = scalar_lea.vmem [#allocation2], 8
  %v559 = vld [vmem:[%s558] sm:$0xff]
  %s560 = scalar_lea.vmem [#allocation3], 80
  %v561 = vld [vmem:[%s560] sm:$0xff]
  %v562 = vadd.f32 %v559, %v561
  %v563 = vadd.f32 %v562, %v553
  %v564 = vxor.u32 %v563, 2147483648
  %v565 = vmul.f32 %v564, 1.442695
  %v566 = vpow.pop %v565
  %v567 = vadd.f32 %v566, 1.0
  %v568 = vrcp.pop %v567
  %v569 = vmul.f32 1.0, %v568
  %v570 = vtanh.pop %v563
  %v571 = vmul.f32 %v569, %v487
  %573 = vrot.lane.b32.xlu0 %v570, 64
  %v574 = vpop.permute.xlu0 %573
  %v576 = vmul.f32 %v569, %v574
  %578 = vrot.lane.b32.xlu0 %v576, 32
  %v579 = vpop.permute.xlu0 %578
  %v581 = vadd.f32 %v571, %v579
  %v582 = vtanh.pop %v581
  %584 = vrot.lane.b32.xlu0 %v582, 64
  %v585 = vpop.permute.xlu0 %584
  %v587 = vmul.f32 %v569, %v585
  %s588 = sadd.s32 %s494, 1
  %s589 = sadd.s32 %s496, 10
  %v590 = vpack.c.bf16 %v587, %v587
  %v592 = vunpack.c.l.b16 %v590
  %v593 = vpack.c.b16 %v592, %v592
  %594 = vrot.lane.b32.xlu0 %v593, 32
  %v595 = vpop.permute.xlu0 %594
  %s597 = smul.addr %s588, 4
  %s598 = scalar_lea.vmem %s6, %s597
  %599 = vst.msk [vmem:[%s598] sm:$0xf] %vm507, %v595
  %s600 = smul.addr %s589, 4
  %s601 = scalar_lea.vmem %s6, %s600
  %602 = vst.msk [vmem:[%s601] sm:$0xf] %vm511, %v595
  %603 = vrot.lane.b32.xlu0 %v590, 32
  %v604 = vpop.permute.xlu0 %603
  %v606 = vsel %vm118, %v604, 0
  %608 = vmatprep.subr.bf16.mxu0 0
  %609 = vmatpush1.bf16.msra.mxu0 %v414
  %610 = vmatprep.subr.bf16.mxu0 0
  %611 = vmatpush1.bf16.msra.mxu0 %v415
  %612 = vmatprep.subr.bf16.mxu0 0
  %613 = vmatpush1.bf16.msra.mxu0 0
  %614 = vmatprep.subr.bf16.mxu0 0
  %615 = vmatpush1.bf16.msra.mxu0 0
  %616 = vmatprep.subr.bf16.mxu0 0
  %617 = vmatpush1.bf16.msra.mxu0 0
  %618 = vmatprep.subr.bf16.mxu0 0
  %619 = vmatpush1.bf16.msra.mxu0 0
  %620 = vmatprep.subr.bf16.mxu0 0
  %621 = vmatpush1.bf16.msra.mxu0 0
  %622 = vmatprep.subr.bf16.mxu0 0
  %623 = vmatpush1.bf16.msra.mxu0 0
  %624 = vmatprep.subr.bf16.mxu0 0
  %625 = vmatpush1.bf16.msra.mxu0 0
  %626 = vmatprep.subr.bf16.mxu0 0
  %627 = vmatpush1.bf16.msra.mxu0 0
  %628 = vmatprep.subr.bf16.mxu0 0
  %629 = vmatpush1.bf16.msra.mxu0 0
  %630 = vmatprep.subr.bf16.mxu0 0
  %631 = vmatpush1.bf16.msra.mxu0 0
  %632 = vmatprep.subr.bf16.mxu0 0
  %633 = vmatpush1.bf16.msra.mxu0 0
  %634 = vmatprep.subr.bf16.mxu0 0
  %635 = vmatpush1.bf16.msra.mxu0 0
  %636 = vmatprep.subr.bf16.mxu0 0
  %637 = vmatpush1.bf16.msra.mxu0 0
  %638 = vmatprep.subr.bf16.mxu0 0
  %639 = vmatpush1.bf16.msra.mxu0 0
  %640 = vmatprep.mubr.bf16.mxu0 0
  %641 = vmatmul.mubr.bf16.gmra.mrb[0].mxu0 %v606
  %v642 = vpop.f32.mrb[0].mxu0
  %v643 = vadd.f32 0.0, %v642
  %v644 = vpop.f32.mrb[0].mxu0
  %v645 = vpop.f32.mrb[0].mxu0
  %v646 = vpop.f32.mrb[0].mxu0
  %647 = vdwg.mxu0
  %s648 = scalar_lea.vmem [#allocation2], 16
  %v649 = vld [vmem:[%s648] sm:$0xff]
  %s650 = scalar_lea.vmem [#allocation3], 72
  %v651 = vld [vmem:[%s650] sm:$0xff]
  %v652 = vadd.f32 %v649, %v651
  %v653 = vadd.f32 %v652, %v643
  %v654 = vxor.u32 %v653, 2147483648
  %v655 = vmul.f32 %v654, 1.442695
  %v656 = vpow.pop %v655
  %v657 = vadd.f32 %v656, 1.0
  %v658 = vrcp.pop %v657
  %v659 = vmul.f32 1.0, %v658
  %v660 = vtanh.pop %v653
  %v661 = vmul.f32 %v659, %v581
  %663 = vrot.lane.b32.xlu0 %v660, 64
  %v664 = vpop.permute.xlu0 %663
  %v666 = vmul.f32 %v659, %v664
  %668 = vrot.lane.b32.xlu0 %v666, 32
  %v669 = vpop.permute.xlu0 %668
  %v671 = vadd.f32 %v661, %v669
  %v672 = vtanh.pop %v671
  %674 = vrot.lane.b32.xlu0 %v672, 64
  %v675 = vpop.permute.xlu0 %674
  %v677 = vmul.f32 %v659, %v675
  %s678 = sadd.s32 %s494, 2
  %s679 = sadd.s32 %s496, 9
  %v680 = vpack.c.bf16 %v677, %v677
  %v682 = vunpack.c.l.b16 %v680
  %v683 = vpack.c.b16 %v682, %v682
  %684 = vrot.lane.b32.xlu0 %v683, 32
  %v685 = vpop.permute.xlu0 %684
  %s687 = smul.addr %s678, 4
  %s688 = scalar_lea.vmem %s6, %s687
  %689 = vst.msk [vmem:[%s688] sm:$0xf] %vm507, %v685
  %s690 = smul.addr %s679, 4
  %s691 = scalar_lea.vmem %s6, %s690
  %692 = vst.msk [vmem:[%s691] sm:$0xf] %vm511, %v685
  %693 = vrot.lane.b32.xlu0 %v680, 32
  %v694 = vpop.permute.xlu0 %693
  %v696 = vsel %vm118, %v694, 0
  %698 = vmatprep.subr.bf16.mxu0 0
  %699 = vmatpush1.bf16.msra.mxu0 %v414
  %700 = vmatprep.subr.bf16.mxu0 0
  %701 = vmatpush1.bf16.msra.mxu0 %v415
  %702 = vmatprep.subr.bf16.mxu0 0
  %703 = vmatpush1.bf16.msra.mxu0 0
  %704 = vmatprep.subr.bf16.mxu0 0
  %705 = vmatpush1.bf16.msra.mxu0 0
  %706 = vmatprep.subr.bf16.mxu0 0
  %707 = vmatpush1.bf16.msra.mxu0 0
  %708 = vmatprep.subr.bf16.mxu0 0
  %709 = vmatpush1.bf16.msra.mxu0 0
  %710 = vmatprep.subr.bf16.mxu0 0
  %711 = vmatpush1.bf16.msra.mxu0 0
  %712 = vmatprep.subr.bf16.mxu0 0
  %713 = vmatpush1.bf16.msra.mxu0 0
  %714 = vmatprep.subr.bf16.mxu0 0
  %715 = vmatpush1.bf16.msra.mxu0 0
  %716 = vmatprep.subr.bf16.mxu0 0
  %717 = vmatpush1.bf16.msra.mxu0 0
  %718 = vmatprep.subr.bf16.mxu0 0
  %719 = vmatpush1.bf16.msra.mxu0 0
  %720 = vmatprep.subr.bf16.mxu0 0
  %721 = vmatpush1.bf16.msra.mxu0 0
  %722 = vmatprep.subr.bf16.mxu0 0
  %723 = vmatpush1.bf16.msra.mxu0 0
  %724 = vmatprep.subr.bf16.mxu0 0
  %725 = vmatpush1.bf16.msra.mxu0 0
  %726 = vmatprep.subr.bf16.mxu0 0
  %727 = vmatpush1.bf16.msra.mxu0 0
  %728 = vmatprep.subr.bf16.mxu0 0
  %729 = vmatpush1.bf16.msra.mxu0 0
  %730 = vmatprep.mubr.bf16.mxu0 0
  %731 = vmatmul.mubr.bf16.gmra.mrb[0].mxu0 %v696
  %v732 = vpop.f32.mrb[0].mxu0
  %v733 = vadd.f32 0.0, %v732
  %v734 = vpop.f32.mrb[0].mxu0
  %v735 = vpop.f32.mrb[0].mxu0
  %v736 = vpop.f32.mrb[0].mxu0
  %737 = vdwg.mxu0
  %s738 = scalar_lea.vmem [#allocation2], 24
  %v739 = vld [vmem:[%s738] sm:$0xff]
  %s740 = scalar_lea.vmem [#allocation3], 64
  %v741 = vld [vmem:[%s740] sm:$0xff]
  %v742 = vadd.f32 %v739, %v741
  %v743 = vadd.f32 %v742, %v733
  %v744 = vxor.u32 %v743, 2147483648
  %v745 = vmul.f32 %v744, 1.442695
  %v746 = vpow.pop %v745
  %v747 = vadd.f32 %v746, 1.0
  %v748 = vrcp.pop %v747
  %v749 = vmul.f32 1.0, %v748
  %v750 = vtanh.pop %v743
  %v751 = vmul.f32 %v749, %v671
  %753 = vrot.lane.b32.xlu0 %v750, 64
  %v754 = vpop.permute.xlu0 %753
  %v756 = vmul.f32 %v749, %v754
  %758 = vrot.lane.b32.xlu0 %v756, 32
  %v759 = vpop.permute.xlu0 %758
  %v761 = vadd.f32 %v751, %v759
  %v762 = vtanh.pop %v761
  %764 = vrot.lane.b32.xlu0 %v762, 64
  %v765 = vpop.permute.xlu0 %764
  %v767 = vmul.f32 %v749, %v765
  %s768 = sadd.s32 %s494, 3
  %s769 = sadd.s32 %s496, 8
  %v770 = vpack.c.bf16 %v767, %v767
  %v772 = vunpack.c.l.b16 %v770
  %v773 = vpack.c.b16 %v772, %v772
  %774 = vrot.lane.b32.xlu0 %v773, 32
  %v775 = vpop.permute.xlu0 %774
  %s777 = smul.addr %s768, 4
  %s778 = scalar_lea.vmem %s6, %s777
  %779 = vst.msk [vmem:[%s778] sm:$0xf] %vm507, %v775
  %s780 = smul.addr %s769, 4
  %s781 = scalar_lea.vmem %s6, %s780
  %782 = vst.msk [vmem:[%s781] sm:$0xf] %vm511, %v775
  %783 = vrot.lane.b32.xlu0 %v770, 32
  %v784 = vpop.permute.xlu0 %783
  %v786 = vsel %vm118, %v784, 0
  %788 = vmatprep.subr.bf16.mxu0 0
  %789 = vmatpush1.bf16.msra.mxu0 %v414
  %790 = vmatprep.subr.bf16.mxu0 0
  %791 = vmatpush1.bf16.msra.mxu0 %v415
  %792 = vmatprep.subr.bf16.mxu0 0
  %793 = vmatpush1.bf16.msra.mxu0 0
  %794 = vmatprep.subr.bf16.mxu0 0
  %795 = vmatpush1.bf16.msra.mxu0 0
  %796 = vmatprep.subr.bf16.mxu0 0
  %797 = vmatpush1.bf16.msra.mxu0 0
  %798 = vmatprep.subr.bf16.mxu0 0
  %799 = vmatpush1.bf16.msra.mxu0 0
  %800 = vmatprep.subr.bf16.mxu0 0
  %801 = vmatpush1.bf16.msra.mxu0 0
  %802 = vmatprep.subr.bf16.mxu0 0
  %803 = vmatpush1.bf16.msra.mxu0 0
  %804 = vmatprep.subr.bf16.mxu0 0
  %805 = vmatpush1.bf16.msra.mxu0 0
  %806 = vmatprep.subr.bf16.mxu0 0
  %807 = vmatpush1.bf16.msra.mxu0 0
  %808 = vmatprep.subr.bf16.mxu0 0
  %809 = vmatpush1.bf16.msra.mxu0 0
  %810 = vmatprep.subr.bf16.mxu0 0
  %811 = vmatpush1.bf16.msra.mxu0 0
  %812 = vmatprep.subr.bf16.mxu0 0
  %813 = vmatpush1.bf16.msra.mxu0 0
  %814 = vmatprep.subr.bf16.mxu0 0
  %815 = vmatpush1.bf16.msra.mxu0 0
  %816 = vmatprep.subr.bf16.mxu0 0
  %817 = vmatpush1.bf16.msra.mxu0 0
  %818 = vmatprep.subr.bf16.mxu0 0
  %819 = vmatpush1.bf16.msra.mxu0 0
  %820 = vmatprep.mubr.bf16.mxu0 0
  %821 = vmatmul.mubr.bf16.gmra.mrb[0].mxu0 %v786
  %v822 = vpop.f32.mrb[0].mxu0
  %v823 = vadd.f32 0.0, %v822
  %v824 = vpop.f32.mrb[0].mxu0
  %v825 = vpop.f32.mrb[0].mxu0
  %v826 = vpop.f32.mrb[0].mxu0
  %827 = vdwg.mxu0
  %s828 = scalar_lea.vmem [#allocation2], 32
  %v829 = vld [vmem:[%s828] sm:$0xff]
  %s830 = scalar_lea.vmem [#allocation3], 56
  %v831 = vld [vmem:[%s830] sm:$0xff]
  %v832 = vadd.f32 %v829, %v831
  %v833 = vadd.f32 %v832, %v823
  %v834 = vxor.u32 %v833, 2147483648
  %v835 = vmul.f32 %v834, 1.442695
  %v836 = vpow.pop %v835
  %v837 = vadd.f32 %v836, 1.0
  %v838 = vrcp.pop %v837
  %v839 = vmul.f32 1.0, %v838
  %v840 = vtanh.pop %v833
  %v841 = vmul.f32 %v839, %v761
  %843 = vrot.lane.b32.xlu0 %v840, 64
  %v844 = vpop.permute.xlu0 %843
  %v846 = vmul.f32 %v839, %v844
  %848 = vrot.lane.b32.xlu0 %v846, 32
  %v849 = vpop.permute.xlu0 %848
  %v851 = vadd.f32 %v841, %v849
  %v852 = vtanh.pop %v851
  %854 = vrot.lane.b32.xlu0 %v852, 64
  %v855 = vpop.permute.xlu0 %854
  %v857 = vmul.f32 %v839, %v855
  %s858 = sadd.s32 %s494, 4
  %s859 = sadd.s32 %s496, 7
  %v860 = vpack.c.bf16 %v857, %v857
  %v862 = vunpack.c.l.b16 %v860
  %v863 = vpack.c.b16 %v862, %v862
  %864 = vrot.lane.b32.xlu0 %v863, 32
  %v865 = vpop.permute.xlu0 %864
  %s867 = smul.addr %s858, 4
  %s868 = scalar_lea.vmem %s6, %s867
  %869 = vst.msk [vmem:[%s868] sm:$0xf] %vm507, %v865
  %s870 = smul.addr %s859, 4
  %s871 = scalar_lea.vmem %s6, %s870
  %872 = vst.msk [vmem:[%s871] sm:$0xf] %vm511, %v865
  %873 = vrot.lane.b32.xlu0 %v860, 32
  %v874 = vpop.permute.xlu0 %873
  %v876 = vsel %vm118, %v874, 0
  %878 = vmatprep.subr.bf16.mxu0 0
  %879 = vmatpush1.bf16.msra.mxu0 %v414
  %880 = vmatprep.subr.bf16.mxu0 0
  %881 = vmatpush1.bf16.msra.mxu0 %v415
  %882 = vmatprep.subr.bf16.mxu0 0
  %883 = vmatpush1.bf16.msra.mxu0 0
  %884 = vmatprep.subr.bf16.mxu0 0
  %885 = vmatpush1.bf16.msra.mxu0 0
  %886 = vmatprep.subr.bf16.mxu0 0
  %887 = vmatpush1.bf16.msra.mxu0 0
  %888 = vmatprep.subr.bf16.mxu0 0
  %889 = vmatpush1.bf16.msra.mxu0 0
  %890 = vmatprep.subr.bf16.mxu0 0
  %891 = vmatpush1.bf16.msra.mxu0 0
  %892 = vmatprep.subr.bf16.mxu0 0
  %893 = vmatpush1.bf16.msra.mxu0 0
  %894 = vmatprep.subr.bf16.mxu0 0
  %895 = vmatpush1.bf16.msra.mxu0 0
  %896 = vmatprep.subr.bf16.mxu0 0
  %897 = vmatpush1.bf16.msra.mxu0 0
  %898 = vmatprep.subr.bf16.mxu0 0
  %899 = vmatpush1.bf16.msra.mxu0 0
  %900 = vmatprep.subr.bf16.mxu0 0
  %901 = vmatpush1.bf16.msra.mxu0 0
  %902 = vmatprep.subr.bf16.mxu0 0
  %903 = vmatpush1.bf16.msra.mxu0 0
  %904 = vmatprep.subr.bf16.mxu0 0
  %905 = vmatpush1.bf16.msra.mxu0 0
  %906 = vmatprep.subr.bf16.mxu0 0
  %907 = vmatpush1.bf16.msra.mxu0 0
  %908 = vmatprep.subr.bf16.mxu0 0
  %909 = vmatpush1.bf16.msra.mxu0 0
  %910 = vmatprep.mubr.bf16.mxu0 0
  %911 = vmatmul.mubr.bf16.gmra.mrb[0].mxu0 %v876
  %v912 = vpop.f32.mrb[0].mxu0
  %v913 = vadd.f32 0.0, %v912
  %v914 = vpop.f32.mrb[0].mxu0
  %v915 = vpop.f32.mrb[0].mxu0
  %v916 = vpop.f32.mrb[0].mxu0
  %917 = vdwg.mxu0
  %s918 = scalar_lea.vmem [#allocation2], 40
  %v919 = vld [vmem:[%s918] sm:$0xff]
  %s920 = scalar_lea.vmem [#allocation3], 48
  %v921 = vld [vmem:[%s920] sm:$0xff]
  %v922 = vadd.f32 %v919, %v921
  %v923 = vadd.f32 %v922, %v913
  %v924 = vxor.u32 %v923, 2147483648
  %v925 = vmul.f32 %v924, 1.442695
  %v926 = vpow.pop %v925
  %v927 = vadd.f32 %v926, 1.0
  %v928 = vrcp.pop %v927
  %v929 = vmul.f32 1.0, %v928
  %v930 = vtanh.pop %v923
  %v931 = vmul.f32 %v929, %v851
  %933 = vrot.lane.b32.xlu0 %v930, 64
  %v934 = vpop.permute.xlu0 %933
  %v936 = vmul.f32 %v929, %v934
  %938 = vrot.lane.b32.xlu0 %v936, 32
  %v939 = vpop.permute.xlu0 %938
  %v941 = vadd.f32 %v931, %v939
  %v942 = vtanh.pop %v941
  %944 = vrot.lane.b32.xlu0 %v942, 64
  %v945 = vpop.permute.xlu0 %944
  %v947 = vmul.f32 %v929, %v945
  %s948 = sadd.s32 %s494, 5
  %s949 = sadd.s32 %s496, 6
  %v950 = vpack.c.bf16 %v947, %v947
  %v952 = vunpack.c.l.b16 %v950
  %v953 = vpack.c.b16 %v952, %v952
  %954 = vrot.lane.b32.xlu0 %v953, 32
  %v955 = vpop.permute.xlu0 %954
  %s957 = smul.addr %s948, 4
  %s958 = scalar_lea.vmem %s6, %s957
  %959 = vst.msk [vmem:[%s958] sm:$0xf] %vm507, %v955
  %s960 = smul.addr %s949, 4
  %s961 = scalar_lea.vmem %s6, %s960
  %962 = vst.msk [vmem:[%s961] sm:$0xf] %vm511, %v955
  %963 = vrot.lane.b32.xlu0 %v950, 32
  %v964 = vpop.permute.xlu0 %963
  %v966 = vsel %vm118, %v964, 0
  %968 = vmatprep.subr.bf16.mxu0 0
  %969 = vmatpush1.bf16.msra.mxu0 %v414
  %970 = vmatprep.subr.bf16.mxu0 0
  %971 = vmatpush1.bf16.msra.mxu0 %v415
  %972 = vmatprep.subr.bf16.mxu0 0
  %973 = vmatpush1.bf16.msra.mxu0 0
  %974 = vmatprep.subr.bf16.mxu0 0
  %975 = vmatpush1.bf16.msra.mxu0 0
  %976 = vmatprep.subr.bf16.mxu0 0
  %977 = vmatpush1.bf16.msra.mxu0 0
  %978 = vmatprep.subr.bf16.mxu0 0
  %979 = vmatpush1.bf16.msra.mxu0 0
  %980 = vmatprep.subr.bf16.mxu0 0
  %981 = vmatpush1.bf16.msra.mxu0 0
  %982 = vmatprep.subr.bf16.mxu0 0
  %983 = vmatpush1.bf16.msra.mxu0 0
  %984 = vmatprep.subr.bf16.mxu0 0
  %985 = vmatpush1.bf16.msra.mxu0 0
  %986 = vmatprep.subr.bf16.mxu0 0
  %987 = vmatpush1.bf16.msra.mxu0 0
  %988 = vmatprep.subr.bf16.mxu0 0
  %989 = vmatpush1.bf16.msra.mxu0 0
  %990 = vmatprep.subr.bf16.mxu0 0
  %991 = vmatpush1.bf16.msra.mxu0 0
  %992 = vmatprep.subr.bf16.mxu0 0
  %993 = vmatpush1.bf16.msra.mxu0 0
  %994 = vmatprep.subr.bf16.mxu0 0
  %995 = vmatpush1.bf16.msra.mxu0 0
  %996 = vmatprep.subr.bf16.mxu0 0
  %997 = vmatpush1.bf16.msra.mxu0 0
  %998 = vmatprep.subr.bf16.mxu0 0
  %999 = vmatpush1.bf16.msra.mxu0 0
  %1000 = vmatprep.mubr.bf16.mxu0 0
  %1001 = vmatmul.mubr.bf16.gmra.mrb[0].mxu0 %v966
  %v1002 = vpop.f32.mrb[0].mxu0
  %v1003 = vadd.f32 0.0, %v1002
  %v1004 = vpop.f32.mrb[0].mxu0
  %v1005 = vpop.f32.mrb[0].mxu0
  %v1006 = vpop.f32.mrb[0].mxu0
  %1007 = vdwg.mxu0
  %s1008 = scalar_lea.vmem [#allocation2], 48
  %v1009 = vld [vmem:[%s1008] sm:$0xff]
  %s1010 = scalar_lea.vmem [#allocation3], 40
  %v1011 = vld [vmem:[%s1010] sm:$0xff]
  %v1012 = vadd.f32 %v1009, %v1011
  %v1013 = vadd.f32 %v1012, %v1003
  %v1014 = vxor.u32 %v1013, 2147483648
  %v1015 = vmul.f32 %v1014, 1.442695
  %v1016 = vpow.pop %v1015
  %v1017 = vadd.f32 %v1016, 1.0
  %v1018 = vrcp.pop %v1017
  %v1019 = vmul.f32 1.0, %v1018
  %v1020 = vtanh.pop %v1013
  %v1021 = vmul.f32 %v1019, %v941
  %1023 = vrot.lane.b32.xlu0 %v1020, 64
  %v1024 = vpop.permute.xlu0 %1023
  %v1026 = vmul.f32 %v1019, %v1024
  %1028 = vrot.lane.b32.xlu0 %v1026, 32
  %v1029 = vpop.permute.xlu0 %1028
  %v1031 = vadd.f32 %v1021, %v1029
  %v1032 = vtanh.pop %v1031
  %1034 = vrot.lane.b32.xlu0 %v1032, 64
  %v1035 = vpop.permute.xlu0 %1034
  %v1037 = vmul.f32 %v1019, %v1035
  %s1038 = sadd.s32 %s494, 6
  %s1039 = sadd.s32 %s496, 5
  %v1040 = vpack.c.bf16 %v1037, %v1037
  %v1042 = vunpack.c.l.b16 %v1040
  %v1043 = vpack.c.b16 %v1042, %v1042
  %1044 = vrot.lane.b32.xlu0 %v1043, 32
  %v1045 = vpop.permute.xlu0 %1044
  %s1047 = smul.addr %s1038, 4
  %s1048 = scalar_lea.vmem %s6, %s1047
  %1049 = vst.msk [vmem:[%s1048] sm:$0xf] %vm507, %v1045
  %s1050 = smul.addr %s1039, 4
  %s1051 = scalar_lea.vmem %s6, %s1050
  %1052 = vst.msk [vmem:[%s1051] sm:$0xf] %vm511, %v1045
  %1053 = vrot.lane.b32.xlu0 %v1040, 32
  %v1054 = vpop.permute.xlu0 %1053
  %v1056 = vsel %vm118, %v1054, 0
  %1058 = vmatprep.subr.bf16.mxu0 0
  %1059 = vmatpush1.bf16.msra.mxu0 %v414
  %1060 = vmatprep.subr.bf16.mxu0 0
  %1061 = vmatpush1.bf16.msra.mxu0 %v415
  %1062 = vmatprep.subr.bf16.mxu0 0
  %1063 = vmatpush1.bf16.msra.mxu0 0
  %1064 = vmatprep.subr.bf16.mxu0 0
  %1065 = vmatpush1.bf16.msra.mxu0 0
  %1066 = vmatprep.subr.bf16.mxu0 0
  %1067 = vmatpush1.bf16.msra.mxu0 0
  %1068 = vmatprep.subr.bf16.mxu0 0
  %1069 = vmatpush1.bf16.msra.mxu0 0
  %1070 = vmatprep.subr.bf16.mxu0 0
  %1071 = vmatpush1.bf16.msra.mxu0 0
  %1072 = vmatprep.subr.bf16.mxu0 0
  %1073 = vmatpush1.bf16.msra.mxu0 0
  %1074 = vmatprep.subr.bf16.mxu0 0
  %1075 = vmatpush1.bf16.msra.mxu0 0
  %1076 = vmatprep.subr.bf16.mxu0 0
  %1077 = vmatpush1.bf16.msra.mxu0 0
  %1078 = vmatprep.subr.bf16.mxu0 0
  %1079 = vmatpush1.bf16.msra.mxu0 0
  %1080 = vmatprep.subr.bf16.mxu0 0
  %1081 = vmatpush1.bf16.msra.mxu0 0
  %1082 = vmatprep.subr.bf16.mxu0 0
  %1083 = vmatpush1.bf16.msra.mxu0 0
  %1084 = vmatprep.subr.bf16.mxu0 0
  %1085 = vmatpush1.bf16.msra.mxu0 0
  %1086 = vmatprep.subr.bf16.mxu0 0
  %1087 = vmatpush1.bf16.msra.mxu0 0
  %1088 = vmatprep.subr.bf16.mxu0 0
  %1089 = vmatpush1.bf16.msra.mxu0 0
  %1090 = vmatprep.mubr.bf16.mxu0 0
  %1091 = vmatmul.mubr.bf16.gmra.mrb[0].mxu0 %v1056
  %v1092 = vpop.f32.mrb[0].mxu0
  %v1093 = vadd.f32 0.0, %v1092
  %v1094 = vpop.f32.mrb[0].mxu0
  %v1095 = vpop.f32.mrb[0].mxu0
  %v1096 = vpop.f32.mrb[0].mxu0
  %1097 = vdwg.mxu0
  %s1098 = scalar_lea.vmem [#allocation2], 56
  %v1099 = vld [vmem:[%s1098] sm:$0xff]
  %s1100 = scalar_lea.vmem [#allocation3], 32
  %v1101 = vld [vmem:[%s1100] sm:$0xff]
  %v1102 = vadd.f32 %v1099, %v1101
  %v1103 = vadd.f32 %v1102, %v1093
  %v1104 = vxor.u32 %v1103, 2147483648
  %v1105 = vmul.f32 %v1104, 1.442695
  %v1106 = vpow.pop %v1105
  %v1107 = vadd.f32 %v1106, 1.0
  %v1108 = vrcp.pop %v1107
  %v1109 = vmul.f32 1.0, %v1108
  %v1110 = vtanh.pop %v1103
  %v1111 = vmul.f32 %v1109, %v1031
  %1113 = vrot.lane.b32.xlu0 %v1110, 64
  %v1114 = vpop.permute.xlu0 %1113
  %v1116 = vmul.f32 %v1109, %v1114
  %1118 = vrot.lane.b32.xlu0 %v1116, 32
  %v1119 = vpop.permute.xlu0 %1118
  %v1121 = vadd.f32 %v1111, %v1119
  %v1122 = vtanh.pop %v1121
  %1124 = vrot.lane.b32.xlu0 %v1122, 64
  %v1125 = vpop.permute.xlu0 %1124
  %v1127 = vmul.f32 %v1109, %v1125
  %s1128 = sadd.s32 %s494, 7
  %s1129 = sadd.s32 %s496, 4
  %v1130 = vpack.c.bf16 %v1127, %v1127
  %v1132 = vunpack.c.l.b16 %v1130
  %v1133 = vpack.c.b16 %v1132, %v1132
  %1134 = vrot.lane.b32.xlu0 %v1133, 32
  %v1135 = vpop.permute.xlu0 %1134
  %s1137 = smul.addr %s1128, 4
  %s1138 = scalar_lea.vmem %s6, %s1137
  %1139 = vst.msk [vmem:[%s1138] sm:$0xf] %vm507, %v1135
  %s1140 = smul.addr %s1129, 4
  %s1141 = scalar_lea.vmem %s6, %s1140
  %1142 = vst.msk [vmem:[%s1141] sm:$0xf] %vm511, %v1135
  %1143 = vrot.lane.b32.xlu0 %v1130, 32
  %v1144 = vpop.permute.xlu0 %1143
  %v1146 = vsel %vm118, %v1144, 0
  %1148 = vmatprep.subr.bf16.mxu0 0
  %1149 = vmatpush1.bf16.msra.mxu0 %v414
  %1150 = vmatprep.subr.bf16.mxu0 0
  %1151 = vmatpush1.bf16.msra.mxu0 %v415
  %1152 = vmatprep.subr.bf16.mxu0 0
  %1153 = vmatpush1.bf16.msra.mxu0 0
  %1154 = vmatprep.subr.bf16.mxu0 0
  %1155 = vmatpush1.bf16.msra.mxu0 0
  %1156 = vmatprep.subr.bf16.mxu0 0
  %1157 = vmatpush1.bf16.msra.mxu0 0
  %1158 = vmatprep.subr.bf16.mxu0 0
  %1159 = vmatpush1.bf16.msra.mxu0 0
  %1160 = vmatprep.subr.bf16.mxu0 0
  %1161 = vmatpush1.bf16.msra.mxu0 0
  %1162 = vmatprep.subr.bf16.mxu0 0
  %1163 = vmatpush1.bf16.msra.mxu0 0
  %1164 = vmatprep.subr.bf16.mxu0 0
  %1165 = vmatpush1.bf16.msra.mxu0 0
  %1166 = vmatprep.subr.bf16.mxu0 0
  %1167 = vmatpush1.bf16.msra.mxu0 0
  %1168 = vmatprep.subr.bf16.mxu0 0
  %1169 = vmatpush1.bf16.msra.mxu0 0
  %1170 = vmatprep.subr.bf16.mxu0 0
  %1171 = vmatpush1.bf16.msra.mxu0 0
  %1172 = vmatprep.subr.bf16.mxu0 0
  %1173 = vmatpush1.bf16.msra.mxu0 0
  %1174 = vmatprep.subr.bf16.mxu0 0
  %1175 = vmatpush1.bf16.msra.mxu0 0
  %1176 = vmatprep.subr.bf16.mxu0 0
  %1177 = vmatpush1.bf16.msra.mxu0 0
  %1178 = vmatprep.subr.bf16.mxu0 0
  %1179 = vmatpush1.bf16.msra.mxu0 0
  %1180 = vmatprep.mubr.bf16.mxu0 0
  %1181 = vmatmul.mubr.bf16.gmra.mrb[0].mxu0 %v1146
  %v1182 = vpop.f32.mrb[0].mxu0
  %v1183 = vadd.f32 0.0, %v1182
  %v1184 = vpop.f32.mrb[0].mxu0
  %v1185 = vpop.f32.mrb[0].mxu0
  %v1186 = vpop.f32.mrb[0].mxu0
  %1187 = vdwg.mxu0
  %s1188 = scalar_lea.vmem [#allocation2], 64
  %v1189 = vld [vmem:[%s1188] sm:$0xff]
  %s1190 = scalar_lea.vmem [#allocation3], 24
  %v1191 = vld [vmem:[%s1190] sm:$0xff]
  %v1192 = vadd.f32 %v1189, %v1191
  %v1193 = vadd.f32 %v1192, %v1183
  %v1194 = vxor.u32 %v1193, 2147483648
  %v1195 = vmul.f32 %v1194, 1.442695
  %v1196 = vpow.pop %v1195
  %v1197 = vadd.f32 %v1196, 1.0
  %v1198 = vrcp.pop %v1197
  %v1199 = vmul.f32 1.0, %v1198
  %v1200 = vtanh.pop %v1193
  %v1201 = vmul.f32 %v1199, %v1121
  %1203 = vrot.lane.b32.xlu0 %v1200, 64
  %v1204 = vpop.permute.xlu0 %1203
  %v1206 = vmul.f32 %v1199, %v1204
  %1208 = vrot.lane.b32.xlu0 %v1206, 32
  %v1209 = vpop.permute.xlu0 %1208
  %v1211 = vadd.f32 %v1201, %v1209
  %v1212 = vtanh.pop %v1211
  %1214 = vrot.lane.b32.xlu0 %v1212, 64
  %v1215 = vpop.permute.xlu0 %1214
  %v1217 = vmul.f32 %v1199, %v1215
  %s1218 = sadd.s32 %s494, 8
  %s1219 = sadd.s32 %s496, 3
  %v1220 = vpack.c.bf16 %v1217, %v1217
  %v1222 = vunpack.c.l.b16 %v1220
  %v1223 = vpack.c.b16 %v1222, %v1222
  %1224 = vrot.lane.b32.xlu0 %v1223, 32
  %v1225 = vpop.permute.xlu0 %1224
  %s1227 = smul.addr %s1218, 4
  %s1228 = scalar_lea.vmem %s6, %s1227
  %1229 = vst.msk [vmem:[%s1228] sm:$0xf] %vm507, %v1225
  %s1230 = smul.addr %s1219, 4
  %s1231 = scalar_lea.vmem %s6, %s1230
  %1232 = vst.msk [vmem:[%s1231] sm:$0xf] %vm511, %v1225
  %1233 = vrot.lane.b32.xlu0 %v1220, 32
  %v1234 = vpop.permute.xlu0 %1233
  %v1236 = vsel %vm118, %v1234, 0
  %1238 = vmatprep.subr.bf16.mxu0 0
  %1239 = vmatpush1.bf16.msra.mxu0 %v414
  %1240 = vmatprep.subr.bf16.mxu0 0
  %1241 = vmatpush1.bf16.msra.mxu0 %v415
  %1242 = vmatprep.subr.bf16.mxu0 0
  %1243 = vmatpush1.bf16.msra.mxu0 0
  %1244 = vmatprep.subr.bf16.mxu0 0
  %1245 = vmatpush1.bf16.msra.mxu0 0
  %1246 = vmatprep.subr.bf16.mxu0 0
  %1247 = vmatpush1.bf16.msra.mxu0 0
  %1248 = vmatprep.subr.bf16.mxu0 0
  %1249 = vmatpush1.bf16.msra.mxu0 0
  %1250 = vmatprep.subr.bf16.mxu0 0
  %1251 = vmatpush1.bf16.msra.mxu0 0
  %1252 = vmatprep.subr.bf16.mxu0 0
  %1253 = vmatpush1.bf16.msra.mxu0 0
  %1254 = vmatprep.subr.bf16.mxu0 0
  %1255 = vmatpush1.bf16.msra.mxu0 0
  %1256 = vmatprep.subr.bf16.mxu0 0
  %1257 = vmatpush1.bf16.msra.mxu0 0
  %1258 = vmatprep.subr.bf16.mxu0 0
  %1259 = vmatpush1.bf16.msra.mxu0 0
  %1260 = vmatprep.subr.bf16.mxu0 0
  %1261 = vmatpush1.bf16.msra.mxu0 0
  %1262 = vmatprep.subr.bf16.mxu0 0
  %1263 = vmatpush1.bf16.msra.mxu0 0
  %1264 = vmatprep.subr.bf16.mxu0 0
  %1265 = vmatpush1.bf16.msra.mxu0 0
  %1266 = vmatprep.subr.bf16.mxu0 0
  %1267 = vmatpush1.bf16.msra.mxu0 0
  %1268 = vmatprep.subr.bf16.mxu0 0
  %1269 = vmatpush1.bf16.msra.mxu0 0
  %1270 = vmatprep.mubr.bf16.mxu0 0
  %1271 = vmatmul.mubr.bf16.gmra.mrb[0].mxu0 %v1236
  %v1272 = vpop.f32.mrb[0].mxu0
  %v1273 = vadd.f32 0.0, %v1272
  %v1274 = vpop.f32.mrb[0].mxu0
  %v1275 = vpop.f32.mrb[0].mxu0
  %v1276 = vpop.f32.mrb[0].mxu0
  %1277 = vdwg.mxu0
  %s1278 = scalar_lea.vmem [#allocation2], 72
  %v1279 = vld [vmem:[%s1278] sm:$0xff]
  %s1280 = scalar_lea.vmem [#allocation3], 16
  %v1281 = vld [vmem:[%s1280] sm:$0xff]
  %v1282 = vadd.f32 %v1279, %v1281
  %v1283 = vadd.f32 %v1282, %v1273
  %v1284 = vxor.u32 %v1283, 2147483648
  %v1285 = vmul.f32 %v1284, 1.442695
  %v1286 = vpow.pop %v1285
  %v1287 = vadd.f32 %v1286, 1.0
  %v1288 = vrcp.pop %v1287
  %v1289 = vmul.f32 1.0, %v1288
  %v1290 = vtanh.pop %v1283
  %v1291 = vmul.f32 %v1289, %v1211
  %1293 = vrot.lane.b32.xlu0 %v1290, 64
  %v1294 = vpop.permute.xlu0 %1293
  %v1296 = vmul.f32 %v1289, %v1294
  %1298 = vrot.lane.b32.xlu0 %v1296, 32
  %v1299 = vpop.permute.xlu0 %1298
  %v1301 = vadd.f32 %v1291, %v1299
  %v1302 = vtanh.pop %v1301
  %1304 = vrot.lane.b32.xlu0 %v1302, 64
  %v1305 = vpop.permute.xlu0 %1304
  %v1307 = vmul.f32 %v1289, %v1305
  %s1308 = sadd.s32 %s494, 9
  %s1309 = sadd.s32 %s496, 2
  %v1310 = vpack.c.bf16 %v1307, %v1307
  %v1312 = vunpack.c.l.b16 %v1310
  %v1313 = vpack.c.b16 %v1312, %v1312
  %1314 = vrot.lane.b32.xlu0 %v1313, 32
  %v1315 = vpop.permute.xlu0 %1314
  %s1317 = smul.addr %s1308, 4
  %s1318 = scalar_lea.vmem %s6, %s1317
  %1319 = vst.msk [vmem:[%s1318] sm:$0xf] %vm507, %v1315
  %s1320 = smul.addr %s1309, 4
  %s1321 = scalar_lea.vmem %s6, %s1320
  %1322 = vst.msk [vmem:[%s1321] sm:$0xf] %vm511, %v1315
  %1323 = vrot.lane.b32.xlu0 %v1310, 32
  %v1324 = vpop.permute.xlu0 %1323
  %v1326 = vsel %vm118, %v1324, 0
  %1328 = vmatprep.subr.bf16.mxu0 0
  %1329 = vmatpush1.bf16.msra.mxu0 %v414
  %1330 = vmatprep.subr.bf16.mxu0 0
  %1331 = vmatpush1.bf16.msra.mxu0 %v415
  %1332 = vmatprep.subr.bf16.mxu0 0
  %1333 = vmatpush1.bf16.msra.mxu0 0
  %1334 = vmatprep.subr.bf16.mxu0 0
  %1335 = vmatpush1.bf16.msra.mxu0 0
  %1336 = vmatprep.subr.bf16.mxu0 0
  %1337 = vmatpush1.bf16.msra.mxu0 0
  %1338 = vmatprep.subr.bf16.mxu0 0
  %1339 = vmatpush1.bf16.msra.mxu0 0
  %1340 = vmatprep.subr.bf16.mxu0 0
  %1341 = vmatpush1.bf16.msra.mxu0 0
  %1342 = vmatprep.subr.bf16.mxu0 0
  %1343 = vmatpush1.bf16.msra.mxu0 0
  %1344 = vmatprep.subr.bf16.mxu0 0
  %1345 = vmatpush1.bf16.msra.mxu0 0
  %1346 = vmatprep.subr.bf16.mxu0 0
  %1347 = vmatpush1.bf16.msra.mxu0 0
  %1348 = vmatprep.subr.bf16.mxu0 0
  %1349 = vmatpush1.bf16.msra.mxu0 0
  %1350 = vmatprep.subr.bf16.mxu0 0
  %1351 = vmatpush1.bf16.msra.mxu0 0
  %1352 = vmatprep.subr.bf16.mxu0 0
  %1353 = vmatpush1.bf16.msra.mxu0 0
  %1354 = vmatprep.subr.bf16.mxu0 0
  %1355 = vmatpush1.bf16.msra.mxu0 0
  %1356 = vmatprep.subr.bf16.mxu0 0
  %1357 = vmatpush1.bf16.msra.mxu0 0
  %1358 = vmatprep.subr.bf16.mxu0 0
  %1359 = vmatpush1.bf16.msra.mxu0 0
  %1360 = vmatprep.mubr.bf16.mxu0 0
  %1361 = vmatmul.mubr.bf16.gmra.mrb[0].mxu0 %v1326
  %v1362 = vpop.f32.mrb[0].mxu0
  %v1363 = vadd.f32 0.0, %v1362
  %v1364 = vpop.f32.mrb[0].mxu0
  %v1365 = vpop.f32.mrb[0].mxu0
  %v1366 = vpop.f32.mrb[0].mxu0
  %1367 = vdwg.mxu0
  %s1368 = scalar_lea.vmem [#allocation2], 80
  %v1369 = vld [vmem:[%s1368] sm:$0xff]
  %s1370 = scalar_lea.vmem [#allocation3], 8
  %v1371 = vld [vmem:[%s1370] sm:$0xff]
  %v1372 = vadd.f32 %v1369, %v1371
  %v1373 = vadd.f32 %v1372, %v1363
  %v1374 = vxor.u32 %v1373, 2147483648
  %v1375 = vmul.f32 %v1374, 1.442695
  %v1376 = vpow.pop %v1375
  %v1377 = vadd.f32 %v1376, 1.0
  %v1378 = vrcp.pop %v1377
  %v1379 = vmul.f32 1.0, %v1378
  %v1380 = vtanh.pop %v1373
  %v1381 = vmul.f32 %v1379, %v1301
  %1383 = vrot.lane.b32.xlu0 %v1380, 64
  %v1384 = vpop.permute.xlu0 %1383
  %v1386 = vmul.f32 %v1379, %v1384
  %1388 = vrot.lane.b32.xlu0 %v1386, 32
  %v1389 = vpop.permute.xlu0 %1388
  %v1391 = vadd.f32 %v1381, %v1389
  %v1392 = vtanh.pop %v1391
  %1394 = vrot.lane.b32.xlu0 %v1392, 64
  %v1395 = vpop.permute.xlu0 %1394
  %v1397 = vmul.f32 %v1379, %v1395
  %s1398 = sadd.s32 %s494, 10
  %s1399 = sadd.s32 %s496, 1
  %v1400 = vpack.c.bf16 %v1397, %v1397
  %v1402 = vunpack.c.l.b16 %v1400
  %v1403 = vpack.c.b16 %v1402, %v1402
  %1404 = vrot.lane.b32.xlu0 %v1403, 32
  %v1405 = vpop.permute.xlu0 %1404
  %s1407 = smul.addr %s1398, 4
  %s1408 = scalar_lea.vmem %s6, %s1407
  %1409 = vst.msk [vmem:[%s1408] sm:$0xf] %vm507, %v1405
  %s1410 = smul.addr %s1399, 4
  %s1411 = scalar_lea.vmem %s6, %s1410
  %1412 = vst.msk [vmem:[%s1411] sm:$0xf] %vm511, %v1405
  %1413 = vrot.lane.b32.xlu0 %v1400, 32
  %v1414 = vpop.permute.xlu0 %1413
  %v1416 = vsel %vm118, %v1414, 0
  %1418 = vmatprep.subr.bf16.mxu0 0
  %1419 = vmatpush1.bf16.msra.mxu0 %v414
  %1420 = vmatprep.subr.bf16.mxu0 0
  %1421 = vmatpush1.bf16.msra.mxu0 %v415
  %1422 = vmatprep.subr.bf16.mxu0 0
  %1423 = vmatpush1.bf16.msra.mxu0 0
  %1424 = vmatprep.subr.bf16.mxu0 0
  %1425 = vmatpush1.bf16.msra.mxu0 0
  %1426 = vmatprep.subr.bf16.mxu0 0
  %1427 = vmatpush1.bf16.msra.mxu0 0
  %1428 = vmatprep.subr.bf16.mxu0 0
  %1429 = vmatpush1.bf16.msra.mxu0 0
  %1430 = vmatprep.subr.bf16.mxu0 0
  %1431 = vmatpush1.bf16.msra.mxu0 0
  %1432 = vmatprep.subr.bf16.mxu0 0
  %1433 = vmatpush1.bf16.msra.mxu0 0
  %1434 = vmatprep.subr.bf16.mxu0 0
  %1435 = vmatpush1.bf16.msra.mxu0 0
  %1436 = vmatprep.subr.bf16.mxu0 0
  %1437 = vmatpush1.bf16.msra.mxu0 0
  %1438 = vmatprep.subr.bf16.mxu0 0
  %1439 = vmatpush1.bf16.msra.mxu0 0
  %1440 = vmatprep.subr.bf16.mxu0 0
  %1441 = vmatpush1.bf16.msra.mxu0 0
  %1442 = vmatprep.subr.bf16.mxu0 0
  %1443 = vmatpush1.bf16.msra.mxu0 0
  %1444 = vmatprep.subr.bf16.mxu0 0
  %1445 = vmatpush1.bf16.msra.mxu0 0
  %1446 = vmatprep.subr.bf16.mxu0 0
  %1447 = vmatpush1.bf16.msra.mxu0 0
  %1448 = vmatprep.subr.bf16.mxu0 0
  %1449 = vmatpush1.bf16.msra.mxu0 0
  %1450 = vmatprep.mubr.bf16.mxu0 0
  %1451 = vmatmul.mubr.bf16.gmra.mrb[0].mxu0 %v1416
  %v1452 = vpop.f32.mrb[0].mxu0
  %v1453 = vadd.f32 0.0, %v1452
  %v1454 = vpop.f32.mrb[0].mxu0
  %v1455 = vpop.f32.mrb[0].mxu0
  %v1456 = vpop.f32.mrb[0].mxu0
  %1457 = vdwg.mxu0
  %s1458 = scalar_lea.vmem [#allocation2], 88
  %v1459 = vld [vmem:[%s1458] sm:$0xff]
  %v1460 = vld [vmem:[#allocation3] sm:$0xff]
  %v1461 = vadd.f32 %v1459, %v1460
  %v1462 = vadd.f32 %v1461, %v1453
  %v1463 = vxor.u32 %v1462, 2147483648
  %v1464 = vmul.f32 %v1463, 1.442695
  %v1465 = vpow.pop %v1464
  %v1466 = vadd.f32 %v1465, 1.0
  %v1467 = vrcp.pop %v1466
  %v1468 = vmul.f32 1.0, %v1467
  %v1469 = vtanh.pop %v1462
  %v1470 = vmul.f32 %v1468, %v1391
  %1472 = vrot.lane.b32.xlu0 %v1469, 64
  %v1473 = vpop.permute.xlu0 %1472
  %v1475 = vmul.f32 %v1468, %v1473
  %1477 = vrot.lane.b32.xlu0 %v1475, 32
  %v1478 = vpop.permute.xlu0 %1477
  %v1480 = vadd.f32 %v1470, %v1478
  %v1481 = vtanh.pop %v1480
  %1483 = vrot.lane.b32.xlu0 %v1481, 64
  %v1484 = vpop.permute.xlu0 %1483
  %v1486 = vmul.f32 %v1468, %v1484
  %s1487 = sadd.s32 %s494, 11
  %v1488 = vpack.c.bf16 %v1486, %v1486
  %v1490 = vunpack.c.l.b16 %v1488
  %v1491 = vpack.c.b16 %v1490, %v1490
  %1492 = vrot.lane.b32.xlu0 %v1491, 32
  %v1493 = vpop.permute.xlu0 %1492
  %s1495 = smul.addr %s1487, 4
  %s1496 = scalar_lea.vmem %s6, %s1495
  %1497 = vst.msk [vmem:[%s1496] sm:$0xf] %vm507, %v1493
  %s1498 = smul.addr %s496, 4
  %s1499 = scalar_lea.vmem %s6, %s1498
  %1500 = vst.msk [vmem:[%s1499] sm:$0xf] %vm511, %v1493
  %1502 = vrot.lane.b32.xlu0 %v1486, 32
  %v1503 = vpop.permute.xlu0 %1502
  %1505 = vst.msk [vmem:[#allocation4] sm:$0xff] %vm118, %v1503
  %1507 = vrot.lane.b32.xlu0 %v1480, 96
  %v1508 = vpop.permute.xlu0 %1507
  %1510 = vst.msk [vmem:[#allocation5] sm:$0xff] %vm118, %v1508
  // Predicated region
  $region30: #{_bilstm_apply.3} parent=0 // pred_check
    _
  $region31: #{_bilstm_apply.3} parent=0 // pred_check_branch
    %1512 = sbr.rel (0) target = $region33
  $region32: #{_bilstm_apply.3} parent=0 // pred_region
    _
  $region33: #{_bilstm_apply.3} parent=0 // pred_fallthru
    _
  // Predicated region
  $region34: #{_bilstm_apply.3} parent=0 // pred_check
    _
  $region35: #{_bilstm_apply.3} parent=0 // pred_check_branch
    %1514 = sbr.rel (0) target = $region37
  $region36: #{_bilstm_apply.3} parent=0 // pred_region
    _
  $region37: #{_bilstm_apply.3} parent=0 // pred_fallthru
    _

</llo_original>
